<compile_context>
chip_gen: v7x
topology: tpu7x:2x2x1
jax: 0.10.0
libtpu: 0.0.40
codegen_flags: <defaults>
</compile_context>

<pallas_src>
import functools

import jax
import jax.numpy as jnp
from jax import lax
from jax.experimental import pallas as pl
from jax.experimental.pallas import tpu as pltpu

LSTM_H = 48     # hidden size of nn.LSTMCell(2, 48); also h_dim of the classifier
GATE_PAD = 64   # per-gate lane pad (4 gates -> 256 MXU output columns, was 512)
HID_PAD = 64    # lane pad of the carried hidden / cell state (was 128)
EPS = 1e-5      # BatchNorm1d default eps


def _lstm_kernel(obs_len, x_ref, h0_ref, c0_ref, wih_ref, whh_ref, b_ref,
                 hout_ref):
    """obs_len LSTMCell(2, 48) steps over one batch block (gates padded to 64)."""
    GP = GATE_PAD
    # Loop-invariant weights loaded once; only h @ W_hh stays on the serial path.
    wih = wih_ref[...]                                        # (2, 4*GP)
    whh = whh_ref[...]                                        # (HID_PAD, 4*GP)
    b = b_ref[...]                                            # (1, 4*GP)
    h = h0_ref[...]                                           # (bb, HID_PAD), cols >= 48 are 0
    c = c0_ref[...]

    # Fully unrolled: obs_len is a static Python int, so this loop IS the full
    # unroll and every slice below is static. The 2-FMA x-projection + bias is
    # recomputed per step (hides completely under the MXU latency) so that only
    # one step's gates are ever live across the unrolled region.
    for t in range(obs_len):
        x_t = x_ref[t]                                        # (bb, 2), static index
        gates = (jnp.dot(h, whh, preferred_element_type=jnp.float32)
                 + x_t[:, 0:1] * wih[0:1, :]
                 + x_t[:, 1:2] * wih[1:2, :]
                 + b)                                         # (bb, 4*GP)
        i = jax.nn.sigmoid(gates[:, 0 * GP:1 * GP])
        f = jax.nn.sigmoid(gates[:, 1 * GP:2 * GP])
        g = jnp.tanh(gates[:, 2 * GP:3 * GP])
        o = jax.nn.sigmoid(gates[:, 3 * GP:4 * GP])
        c = f * c + i * g                                     # padded cols stay exactly 0
        h = o * jnp.tanh(c)
    hout_ref[...] = h


def _classifier_kernel(h_ref, w1_ref, b1_ref, g1_ref, be1_ref,
                       w2_ref, b2_ref, g2_ref, be2_ref, out_ref):
    """real_classifier: Linear + BatchNorm1d(train) + ReLU, twice, full batch."""
    inv_n = 1.0 / h_ref.shape[0]                              # static Python float

    def bn_relu(z, gamma, beta):
        # Fused single-pass BN stats; variance clamped at 0 before rsqrt to
        # guard against catastrophic cancellation (review concern).
        s1 = jnp.sum(z, axis=0, keepdims=True)
        s2 = jnp.sum(z * z, axis=0, keepdims=True)
        mean = s1 * inv_n
        var = jnp.maximum(s2 * inv_n - mean * mean, 0.0)      # biased variance
        scale = gamma * lax.rsqrt(var + EPS)
        shift = beta - mean * scale
        return jnp.maximum(z * scale + shift, 0.0)            # ReLU

    z1 = jnp.dot(h_ref[...], w1_ref[...],
                 preferred_element_type=jnp.float32) + b1_ref[...]
    z1 = bn_relu(z1, g1_ref[...], be1_ref[...])               # (batch, mlp_dim)
    # Final Linear(mlp_dim, 1) as VPU multiply + lane reduction (no N=1 matmul).
    z2 = jnp.sum(z1 * w2_ref[...], axis=-1, keepdims=True) + b2_ref[...]
    out_ref[...] = bn_relu(z2, g2_ref[...], be2_ref[...])


def pack_params(p):
    """One-time repack: pad each LSTM gate to its own 64-lane block and pad the
    hidden width 48 -> 64 so the per-step MXU output is 256 columns wide.
    Padded weight rows/cols and bias entries are zero, so padded hidden columns
    stay exactly 0 through the recurrence (i=f=o=0.5, g=0 on padded lanes)."""
    H, GP, HP = LSTM_H, GATE_PAD, HID_PAD

    def pad_gate_cols(w):                                     # (rows, 4H) -> (rows, 4*GP)
        out = jnp.zeros((w.shape[0], 4 * GP), jnp.float32)
        for g in range(4):
            out = out.at[:, g * GP:g * GP + H].set(w[:, g * H:(g + 1) * H])
        return out

    mlp_dim = p["w1"].shape[1]
    return {
        "w_ih": pad_gate_cols(p["w_ih"]),                                         # (2, 4*GP)
        "w_hh": jnp.zeros((HP, 4 * GP), jnp.float32).at[:H].set(
            pad_gate_cols(p["w_hh"])),                                            # (HP, 4*GP)
        "b_lstm": pad_gate_cols(p["b_lstm"]),                                     # (1, 4*GP)
        "w1": jnp.zeros((HP, mlp_dim), jnp.float32).at[:H].set(p["w1"]),          # (HP, mlp)
        "b1": p["b1"], "g1": p["g1"], "be1": p["be1"],
        "w2_row": p["w2"].T,                                                      # (1, mlp)
        "b2": p["b2"], "g2": p["g2"], "be2": p["be2"],
    }


def trajectory_discriminator(traj, traj_rel, h0, c0, packed, *, obs_len,
                             batch_block=128):
    """d_type='local' forward. `traj` is unused in the local branch (kept for parity)."""
    del traj
    _, batch, _ = traj_rel.shape
    HP = HID_PAD

    # Zero-pad the random (h0, c0) to the lane-aligned hidden width; padded
    # columns remain 0 through the whole recurrence (zero weights + zero bias),
    # and w1's padded rows are zero so they never reach the classifier.
    h0p = jnp.zeros((batch, HP), jnp.float32).at[:, :LSTM_H].set(h0)
    c0p = jnp.zeros((batch, HP), jnp.float32).at[:, :LSTM_H].set(c0)

    bb = min(batch_block, batch)
    nb = pl.cdiv(batch, bb)

    def full(arr):  # whole-array block; constant index -> fetched once
        return pl.BlockSpec(arr.shape, lambda i: (0,) * arr.ndim)

    # ---- Kernel A: LSTM recurrence, gridded over batch ("parallel") -------
    final_h = pl.pallas_call(
        functools.partial(_lstm_kernel, obs_len),
        out_shape=jax.ShapeDtypeStruct((batch, HP), jnp.float32),
        grid_spec=pltpu.PrefetchScalarGridSpec(
            num_scalar_prefetch=0,
            grid=(nb,),
            in_specs=[
                # Only the observation window (time block 0) of traj_rel is
                # mapped in; the pred_len half is never DMA'd.
                pl.BlockSpec((obs_len, bb, 2), lambda i: (0, i, 0)),
                pl.BlockSpec((bb, HP), lambda i: (i, 0)),
                pl.BlockSpec((bb, HP), lambda i: (i, 0)),
                full(packed["w_ih"]),
                full(packed["w_hh"]),
                full(packed["b_lstm"]),
            ],
            out_specs=pl.BlockSpec((bb, HP), lambda i: (i, 0)),
        ),
        compiler_params=pltpu.CompilerParams(
            dimension_semantics=("parallel",)),
    )(traj_rel, h0p, c0p, packed["w_ih"], packed["w_hh"], packed["b_lstm"])

    # ---- Kernel B: classifier, grid-less (BatchNorm needs full-batch stats) --
    vmem = pl.BlockSpec(memory_space=pltpu.MemorySpace.VMEM)
    cls_args = (final_h, packed["w1"], packed["b1"], packed["g1"], packed["be1"],
                packed["w2_row"], packed["b2"], packed["g2"], packed["be2"])
    return pl.pallas_call(
        _classifier_kernel,
        out_shape=jax.ShapeDtypeStruct((batch, 1), jnp.float32),
        in_specs=[vmem] * len(cls_args),
        out_specs=vmem,
    )(*cls_args)


def _reference(traj_rel_obs, h0, c0, p):
    """Pure-JAX reference of the same forward pass (unpadded parameters)."""
    h, c = h0, c0
    for t in range(traj_rel_obs.shape[0]):
        gates = traj_rel_obs[t] @ p["w_ih"] + h @ p["w_hh"] + p["b_lstm"]
        i, f, g, o = jnp.split(gates, 4, axis=1)
        c = jax.nn.sigmoid(f) * c + jax.nn.sigmoid(i) * jnp.tanh(g)
        h = jax.nn.sigmoid(o) * jnp.tanh(c)

    def bn_relu(z, gamma, beta):
        m = z.mean(0, keepdims=True)
        v = ((z - m) ** 2).mean(0, keepdims=True)
        return jnp.maximum(gamma * (z - m) / jnp.sqrt(v + EPS) + beta, 0.0)

    z1 = bn_relu(h @ p["w1"] + p["b1"], p["g1"], p["be1"])
    return bn_relu(z1 @ p["w2"] + p["b2"], p["g2"], p["be2"])


def _uniform(key, shape, fan_in):
    bound = 1.0 / jnp.sqrt(jnp.float32(fan_in))
    return jax.random.uniform(key, shape, jnp.float32, -bound, bound)


if __name__ == "__main__":
    # Small, module-consistent shapes.
    obs_len, pred_len = 8, 8
    seq_len = obs_len + pred_len
    batch = 4
    mlp_dim = 256          # small stand-in for the default 1024
    h_dim = LSTM_H         # 48 (see notes at top)

    key = jax.random.PRNGKey(0)
    ks = jax.random.split(key, 12)

    # Inputs (time-major, like PyTorch).
    traj = jax.random.normal(ks[0], (seq_len, batch, 2), jnp.float32)
    traj_rel = jax.random.normal(ks[1], (seq_len, batch, 2), jnp.float32)

    # init_hidden_traj_lstm -> torch.randn(batch, 48), made deterministic here.
    h0 = jax.random.normal(ks[2], (batch, LSTM_H), jnp.float32)
    c0 = jax.random.normal(ks[3], (batch, LSTM_H), jnp.float32)

    # nn.LSTMCell(2, 48) parameters (stored pre-transposed for x @ W).
    params = {
        "w_ih": _uniform(ks[4], (2, 4 * LSTM_H), LSTM_H),
        "w_hh": _uniform(ks[5], (LSTM_H, 4 * LSTM_H), LSTM_H),
        "b_lstm": (_uniform(ks[6], (1, 4 * LSTM_H), LSTM_H)
                   + _uniform(ks[7], (1, 4 * LSTM_H), LSTM_H)),   # b_ih + b_hh
        # real_classifier: Linear(48, mlp_dim) + BN + ReLU, Linear(mlp_dim, 1) + BN + ReLU
        "w1": _uniform(ks[8], (h_dim, mlp_dim), h_dim),
        "b1": _uniform(ks[9], (1, mlp_dim), h_dim),
        "g1": jnp.ones((1, mlp_dim), jnp.float32),     # BatchNorm1d default weight
        "be1": jnp.zeros((1, mlp_dim), jnp.float32),   # BatchNorm1d default bias
        "w2": _uniform(ks[10], (mlp_dim, 1), mlp_dim),
        "b2": _uniform(ks[11], (1, 1), mlp_dim),
        "g2": jnp.ones((1, 1), jnp.float32),
        "be2": jnp.zeros((1, 1), jnp.float32),
    }

    packed = jax.tree_util.tree_map(jax.block_until_ready, pack_params(params))

    scores = trajectory_discriminator(traj, traj_rel, h0, c0, packed,
                                      obs_len=obs_len)
    scores = jax.block_until_ready(scores)

    ref = _reference(traj_rel[:obs_len], h0, c0, params)
    assert scores.shape == (batch, 1), scores.shape
    assert jnp.allclose(scores, ref, rtol=1e-4, atol=1e-4), (scores, ref)

    print("KERNEL_OK")
</pallas_src>

<mosaic_0001>
module attributes {stable_mosaic.version = 11 : i64} {
  func.func @_lstm_kernel(%arg0: i32, %arg1: memref<8x4x2xf32, #tpu.memory_space<vmem>>, %arg2: memref<4x64xf32, #tpu.memory_space<vmem>>, %arg3: memref<4x64xf32, #tpu.memory_space<vmem>>, %arg4: memref<2x256xf32, #tpu.memory_space<vmem>>, %arg5: memref<64x256xf32, #tpu.memory_space<vmem>>, %arg6: memref<1x256xf32, #tpu.memory_space<vmem>>, %arg7: memref<4x64xf32, #tpu.memory_space<vmem>>) attributes {dimension_semantics = [#tpu.dimension_semantics<parallel>], iteration_bounds = array<i64: 1>, scalar_prefetch = 0 : i64, scratch_operands = 0 : i64, tpu.core_type = #tpu.core_type<tc>, window_params = [{transform_indices = @transform_0, window_bounds = array<i64: 8, 4, 2>}, {transform_indices = @transform_1, window_bounds = array<i64: 4, 64>}, {transform_indices = @transform_2, window_bounds = array<i64: 4, 64>}, {pipeline_mode = #tpu.pipeline_mode<synchronous>, transform_indices = @transform_3, window_bounds = array<i64: 2, 256>}, {pipeline_mode = #tpu.pipeline_mode<synchronous>, transform_indices = @transform_4, window_bounds = array<i64: 64, 256>}, {pipeline_mode = #tpu.pipeline_mode<synchronous>, transform_indices = @transform_5, window_bounds = array<i64: 1, 256>}, {transform_indices = @transform_6, window_bounds = array<i64: 4, 64>}]} {
    %c0 = arith.constant 0 : index
    %c0_0 = arith.constant 0 : index
    %0 = vector.load %arg4[%c0, %c0_0] : memref<2x256xf32, #tpu.memory_space<vmem>>, vector<2x256xf32>
    %c0_1 = arith.constant 0 : index
    %c0_2 = arith.constant 0 : index
    %1 = vector.load %arg5[%c0_1, %c0_2] : memref<64x256xf32, #tpu.memory_space<vmem>>, vector<64x256xf32>
    %c0_3 = arith.constant 0 : index
    %c0_4 = arith.constant 0 : index
    %2 = vector.load %arg6[%c0_3, %c0_4] : memref<1x256xf32, #tpu.memory_space<vmem>>, vector<1x256xf32>
    %c0_5 = arith.constant 0 : index
    %c0_6 = arith.constant 0 : index
    %3 = vector.load %arg2[%c0_5, %c0_6] : memref<4x64xf32, #tpu.memory_space<vmem>>, vector<4x64xf32>
    %c0_7 = arith.constant 0 : index
    %c0_8 = arith.constant 0 : index
    %4 = vector.load %arg3[%c0_7, %c0_8] : memref<4x64xf32, #tpu.memory_space<vmem>>, vector<4x64xf32>
    %c0_9 = arith.constant 0 : index
    %c0_10 = arith.constant 0 : index
    %c0_11 = arith.constant 0 : index
    %5 = vector.load %arg1[%c0_9, %c0_10, %c0_11] : memref<8x4x2xf32, #tpu.memory_space<vmem>>, vector<1x4x2xf32>
    %6 = vector.shape_cast %5 : vector<1x4x2xf32> to vector<4x2xf32>
    %cst = arith.constant dense<0.000000e+00> : vector<4x256xf32>
    %7 = tpu.matmul %3, %1, %cst {dimension_numbers = #tpu.dot_dimension_numbers<[1], [0], [0], [1], [0, 0, 1, 1], [], []>} : vector<4x64xf32>, vector<64x256xf32>, vector<4x256xf32> -> vector<4x256xf32>
    %8 = vector.extract_strided_slice %6 {offsets = [0, 0], sizes = [4, 1], strides = [1, 1]} : vector<4x2xf32> to vector<4x1xf32>
    %9 = vector.extract_strided_slice %0 {offsets = [0, 0], sizes = [1, 256], strides = [1, 1]} : vector<2x256xf32> to vector<1x256xf32>
    %10 = vector.broadcast %8 : vector<4x1xf32> to vector<4x256xf32>
    %11 = vector.broadcast %9 : vector<1x256xf32> to vector<4x256xf32>
    %12 = arith.mulf %10, %11 : vector<4x256xf32>
    %13 = arith.addf %7, %12 : vector<4x256xf32>
    %14 = vector.extract_strided_slice %6 {offsets = [0, 1], sizes = [4, 1], strides = [1, 1]} : vector<4x2xf32> to vector<4x1xf32>
    %15 = vector.extract_strided_slice %0 {offsets = [1, 0], sizes = [1, 256], strides = [1, 1]} : vector<2x256xf32> to vector<1x256xf32>
    %16 = vector.broadcast %14 : vector<4x1xf32> to vector<4x256xf32>
    %17 = vector.broadcast %15 : vector<1x256xf32> to vector<4x256xf32>
    %18 = arith.mulf %16, %17 : vector<4x256xf32>
    %19 = arith.addf %13, %18 : vector<4x256xf32>
    %20 = vector.broadcast %2 : vector<1x256xf32> to vector<4x256xf32>
    %21 = arith.addf %19, %20 : vector<4x256xf32>
    %22 = vector.extract_strided_slice %21 {offsets = [0, 0], sizes = [4, 64], strides = [1, 1]} : vector<4x256xf32> to vector<4x64xf32>
    %23 = arith.negf %22 : vector<4x64xf32>
    %24 = math.exp %23 : vector<4x64xf32>
    %cst_12 = arith.constant 1.000000e+00 : f32
    %25 = vector.broadcast %cst_12 : f32 to vector<4x64xf32>
    %26 = arith.addf %25, %24 : vector<4x64xf32>
    %27 = arith.divf %25, %26 : vector<4x64xf32>
    %28 = vector.extract_strided_slice %21 {offsets = [0, 64], sizes = [4, 64], strides = [1, 1]} : vector<4x256xf32> to vector<4x64xf32>
    %29 = arith.negf %28 : vector<4x64xf32>
    %30 = math.exp %29 : vector<4x64xf32>
    %cst_13 = arith.constant 1.000000e+00 : f32
    %31 = vector.broadcast %cst_13 : f32 to vector<4x64xf32>
    %32 = arith.addf %31, %30 : vector<4x64xf32>
    %33 = arith.divf %31, %32 : vector<4x64xf32>
    %34 = vector.extract_strided_slice %21 {offsets = [0, 128], sizes = [4, 64], strides = [1, 1]} : vector<4x256xf32> to vector<4x64xf32>
    %35 = math.tanh %34 : vector<4x64xf32>
    %36 = vector.extract_strided_slice %21 {offsets = [0, 192], sizes = [4, 64], strides = [1, 1]} : vector<4x256xf32> to vector<4x64xf32>
    %37 = arith.negf %36 : vector<4x64xf32>
    %38 = math.exp %37 : vector<4x64xf32>
    %cst_14 = arith.constant 1.000000e+00 : f32
    %39 = vector.broadcast %cst_14 : f32 to vector<4x64xf32>
    %40 = arith.addf %39, %38 : vector<4x64xf32>
    %41 = arith.divf %39, %40 : vector<4x64xf32>
    %42 = arith.mulf %33, %4 : vector<4x64xf32>
    %43 = arith.mulf %27, %35 : vector<4x64xf32>
    %44 = arith.addf %42, %43 : vector<4x64xf32>
    %45 = math.tanh %44 : vector<4x64xf32>
    %46 = arith.mulf %41, %45 : vector<4x64xf32>
    %c1 = arith.constant 1 : index
    %c0_15 = arith.constant 0 : index
    %c0_16 = arith.constant 0 : index
    %47 = vector.load %arg1[%c1, %c0_15, %c0_16] : memref<8x4x2xf32, #tpu.memory_space<vmem>>, vector<1x4x2xf32>
    %48 = vector.shape_cast %47 : vector<1x4x2xf32> to vector<4x2xf32>
    %cst_17 = arith.constant dense<0.000000e+00> : vector<4x256xf32>
    %49 = tpu.matmul %46, %1, %cst_17 {dimension_numbers = #tpu.dot_dimension_numbers<[1], [0], [0], [1], [0, 0, 1, 1], [], []>} : vector<4x64xf32>, vector<64x256xf32>, vector<4x256xf32> -> vector<4x256xf32>
    %50 = vector.extract_strided_slice %48 {offsets = [0, 0], sizes = [4, 1], strides = [1, 1]} : vector<4x2xf32> to vector<4x1xf32>
    %51 = vector.extract_strided_slice %0 {offsets = [0, 0], sizes = [1, 256], strides = [1, 1]} : vector<2x256xf32> to vector<1x256xf32>
    %52 = vector.broadcast %50 : vector<4x1xf32> to vector<4x256xf32>
    %53 = vector.broadcast %51 : vector<1x256xf32> to vector<4x256xf32>
    %54 = arith.mulf %52, %53 : vector<4x256xf32>
    %55 = arith.addf %49, %54 : vector<4x256xf32>
    %56 = vector.extract_strided_slice %48 {offsets = [0, 1], sizes = [4, 1], strides = [1, 1]} : vector<4x2xf32> to vector<4x1xf32>
    %57 = vector.extract_strided_slice %0 {offsets = [1, 0], sizes = [1, 256], strides = [1, 1]} : vector<2x256xf32> to vector<1x256xf32>
    %58 = vector.broadcast %56 : vector<4x1xf32> to vector<4x256xf32>
    %59 = vector.broadcast %57 : vector<1x256xf32> to vector<4x256xf32>
    %60 = arith.mulf %58, %59 : vector<4x256xf32>
    %61 = arith.addf %55, %60 : vector<4x256xf32>
    %62 = vector.broadcast %2 : vector<1x256xf32> to vector<4x256xf32>
    %63 = arith.addf %61, %62 : vector<4x256xf32>
    %64 = vector.extract_strided_slice %63 {offsets = [0, 0], sizes = [4, 64], strides = [1, 1]} : vector<4x256xf32> to vector<4x64xf32>
    %65 = arith.negf %64 : vector<4x64xf32>
    %66 = math.exp %65 : vector<4x64xf32>
    %cst_18 = arith.constant 1.000000e+00 : f32
    %67 = vector.broadcast %cst_18 : f32 to vector<4x64xf32>
    %68 = arith.addf %67, %66 : vector<4x64xf32>
    %69 = arith.divf %67, %68 : vector<4x64xf32>
    %70 = vector.extract_strided_slice %63 {offsets = [0, 64], sizes = [4, 64], strides = [1, 1]} : vector<4x256xf32> to vector<4x64xf32>
    %71 = arith.negf %70 : vector<4x64xf32>
    %72 = math.exp %71 : vector<4x64xf32>
    %cst_19 = arith.constant 1.000000e+00 : f32
    %73 = vector.broadcast %cst_19 : f32 to vector<4x64xf32>
    %74 = arith.addf %73, %72 : vector<4x64xf32>
    %75 = arith.divf %73, %74 : vector<4x64xf32>
    %76 = vector.extract_strided_slice %63 {offsets = [0, 128], sizes = [4, 64], strides = [1, 1]} : vector<4x256xf32> to vector<4x64xf32>
    %77 = math.tanh %76 : vector<4x64xf32>
    %78 = vector.extract_strided_slice %63 {offsets = [0, 192], sizes = [4, 64], strides = [1, 1]} : vector<4x256xf32> to vector<4x64xf32>
    %79 = arith.negf %78 : vector<4x64xf32>
    %80 = math.exp %79 : vector<4x64xf32>
    %cst_20 = arith.constant 1.000000e+00 : f32
    %81 = vector.broadcast %cst_20 : f32 to vector<4x64xf32>
    %82 = arith.addf %81, %80 : vector<4x64xf32>
    %83 = arith.divf %81, %82 : vector<4x64xf32>
    %84 = arith.mulf %75, %44 : vector<4x64xf32>
    %85 = arith.mulf %69, %77 : vector<4x64xf32>
    %86 = arith.addf %84, %85 : vector<4x64xf32>
    %87 = math.tanh %86 : vector<4x64xf32>
    %88 = arith.mulf %83, %87 : vector<4x64xf32>
    %c2 = arith.constant 2 : index
    %c0_21 = arith.constant 0 : index
    %c0_22 = arith.constant 0 : index
    %89 = vector.load %arg1[%c2, %c0_21, %c0_22] : memref<8x4x2xf32, #tpu.memory_space<vmem>>, vector<1x4x2xf32>
    %90 = vector.shape_cast %89 : vector<1x4x2xf32> to vector<4x2xf32>
    %cst_23 = arith.constant dense<0.000000e+00> : vector<4x256xf32>
    %91 = tpu.matmul %88, %1, %cst_23 {dimension_numbers = #tpu.dot_dimension_numbers<[1], [0], [0], [1], [0, 0, 1, 1], [], []>} : vector<4x64xf32>, vector<64x256xf32>, vector<4x256xf32> -> vector<4x256xf32>
    %92 = vector.extract_strided_slice %90 {offsets = [0, 0], sizes = [4, 1], strides = [1, 1]} : vector<4x2xf32> to vector<4x1xf32>
    %93 = vector.extract_strided_slice %0 {offsets = [0, 0], sizes = [1, 256], strides = [1, 1]} : vector<2x256xf32> to vector<1x256xf32>
    %94 = vector.broadcast %92 : vector<4x1xf32> to vector<4x256xf32>
    %95 = vector.broadcast %93 : vector<1x256xf32> to vector<4x256xf32>
    %96 = arith.mulf %94, %95 : vector<4x256xf32>
    %97 = arith.addf %91, %96 : vector<4x256xf32>
    %98 = vector.extract_strided_slice %90 {offsets = [0, 1], sizes = [4, 1], strides = [1, 1]} : vector<4x2xf32> to vector<4x1xf32>
    %99 = vector.extract_strided_slice %0 {offsets = [1, 0], sizes = [1, 256], strides = [1, 1]} : vector<2x256xf32> to vector<1x256xf32>
    %100 = vector.broadcast %98 : vector<4x1xf32> to vector<4x256xf32>
    %101 = vector.broadcast %99 : vector<1x256xf32> to vector<4x256xf32>
    %102 = arith.mulf %100, %101 : vector<4x256xf32>
    %103 = arith.addf %97, %102 : vector<4x256xf32>
    %104 = vector.broadcast %2 : vector<1x256xf32> to vector<4x256xf32>
    %105 = arith.addf %103, %104 : vector<4x256xf32>
    %106 = vector.extract_strided_slice %105 {offsets = [0, 0], sizes = [4, 64], strides = [1, 1]} : vector<4x256xf32> to vector<4x64xf32>
    %107 = arith.negf %106 : vector<4x64xf32>
    %108 = math.exp %107 : vector<4x64xf32>
    %cst_24 = arith.constant 1.000000e+00 : f32
    %109 = vector.broadcast %cst_24 : f32 to vector<4x64xf32>
    %110 = arith.addf %109, %108 : vector<4x64xf32>
    %111 = arith.divf %109, %110 : vector<4x64xf32>
    %112 = vector.extract_strided_slice %105 {offsets = [0, 64], sizes = [4, 64], strides = [1, 1]} : vector<4x256xf32> to vector<4x64xf32>
    %113 = arith.negf %112 : vector<4x64xf32>
    %114 = math.exp %113 : vector<4x64xf32>
    %cst_25 = arith.constant 1.000000e+00 : f32
    %115 = vector.broadcast %cst_25 : f32 to vector<4x64xf32>
    %116 = arith.addf %115, %114 : vector<4x64xf32>
    %117 = arith.divf %115, %116 : vector<4x64xf32>
    %118 = vector.extract_strided_slice %105 {offsets = [0, 128], sizes = [4, 64], strides = [1, 1]} : vector<4x256xf32> to vector<4x64xf32>
    %119 = math.tanh %118 : vector<4x64xf32>
    %120 = vector.extract_strided_slice %105 {offsets = [0, 192], sizes = [4, 64], strides = [1, 1]} : vector<4x256xf32> to vector<4x64xf32>
    %121 = arith.negf %120 : vector<4x64xf32>
    %122 = math.exp %121 : vector<4x64xf32>
    %cst_26 = arith.constant 1.000000e+00 : f32
    %123 = vector.broadcast %cst_26 : f32 to vector<4x64xf32>
    %124 = arith.addf %123, %122 : vector<4x64xf32>
    %125 = arith.divf %123, %124 : vector<4x64xf32>
    %126 = arith.mulf %117, %86 : vector<4x64xf32>
    %127 = arith.mulf %111, %119 : vector<4x64xf32>
    %128 = arith.addf %126, %127 : vector<4x64xf32>
    %129 = math.tanh %128 : vector<4x64xf32>
    %130 = arith.mulf %125, %129 : vector<4x64xf32>
    %c3 = arith.constant 3 : index
    %c0_27 = arith.constant 0 : index
    %c0_28 = arith.constant 0 : index
    %131 = vector.load %arg1[%c3, %c0_27, %c0_28] : memref<8x4x2xf32, #tpu.memory_space<vmem>>, vector<1x4x2xf32>
    %132 = vector.shape_cast %131 : vector<1x4x2xf32> to vector<4x2xf32>
    %cst_29 = arith.constant dense<0.000000e+00> : vector<4x256xf32>
    %133 = tpu.matmul %130, %1, %cst_29 {dimension_numbers = #tpu.dot_dimension_numbers<[1], [0], [0], [1], [0, 0, 1, 1], [], []>} : vector<4x64xf32>, vector<64x256xf32>, vector<4x256xf32> -> vector<4x256xf32>
    %134 = vector.extract_strided_slice %132 {offsets = [0, 0], sizes = [4, 1], strides = [1, 1]} : vector<4x2xf32> to vector<4x1xf32>
    %135 = vector.extract_strided_slice %0 {offsets = [0, 0], sizes = [1, 256], strides = [1, 1]} : vector<2x256xf32> to vector<1x256xf32>
    %136 = vector.broadcast %134 : vector<4x1xf32> to vector<4x256xf32>
    %137 = vector.broadcast %135 : vector<1x256xf32> to vector<4x256xf32>
    %138 = arith.mulf %136, %137 : vector<4x256xf32>
    %139 = arith.addf %133, %138 : vector<4x256xf32>
    %140 = vector.extract_strided_slice %132 {offsets = [0, 1], sizes = [4, 1], strides = [1, 1]} : vector<4x2xf32> to vector<4x1xf32>
    %141 = vector.extract_strided_slice %0 {offsets = [1, 0], sizes = [1, 256], strides = [1, 1]} : vector<2x256xf32> to vector<1x256xf32>
    %142 = vector.broadcast %140 : vector<4x1xf32> to vector<4x256xf32>
    %143 = vector.broadcast %141 : vector<1x256xf32> to vector<4x256xf32>
    %144 = arith.mulf %142, %143 : vector<4x256xf32>
    %145 = arith.addf %139, %144 : vector<4x256xf32>
    %146 = vector.broadcast %2 : vector<1x256xf32> to vector<4x256xf32>
    %147 = arith.addf %145, %146 : vector<4x256xf32>
    %148 = vector.extract_strided_slice %147 {offsets = [0, 0], sizes = [4, 64], strides = [1, 1]} : vector<4x256xf32> to vector<4x64xf32>
    %149 = arith.negf %148 : vector<4x64xf32>
    %150 = math.exp %149 : vector<4x64xf32>
    %cst_30 = arith.constant 1.000000e+00 : f32
    %151 = vector.broadcast %cst_30 : f32 to vector<4x64xf32>
    %152 = arith.addf %151, %150 : vector<4x64xf32>
    %153 = arith.divf %151, %152 : vector<4x64xf32>
    %154 = vector.extract_strided_slice %147 {offsets = [0, 64], sizes = [4, 64], strides = [1, 1]} : vector<4x256xf32> to vector<4x64xf32>
    %155 = arith.negf %154 : vector<4x64xf32>
    %156 = math.exp %155 : vector<4x64xf32>
    %cst_31 = arith.constant 1.000000e+00 : f32
    %157 = vector.broadcast %cst_31 : f32 to vector<4x64xf32>
    %158 = arith.addf %157, %156 : vector<4x64xf32>
    %159 = arith.divf %157, %158 : vector<4x64xf32>
    %160 = vector.extract_strided_slice %147 {offsets = [0, 128], sizes = [4, 64], strides = [1, 1]} : vector<4x256xf32> to vector<4x64xf32>
    %161 = math.tanh %160 : vector<4x64xf32>
    %162 = vector.extract_strided_slice %147 {offsets = [0, 192], sizes = [4, 64], strides = [1, 1]} : vector<4x256xf32> to vector<4x64xf32>
    %163 = arith.negf %162 : vector<4x64xf32>
    %164 = math.exp %163 : vector<4x64xf32>
    %cst_32 = arith.constant 1.000000e+00 : f32
    %165 = vector.broadcast %cst_32 : f32 to vector<4x64xf32>
    %166 = arith.addf %165, %164 : vector<4x64xf32>
    %167 = arith.divf %165, %166 : vector<4x64xf32>
    %168 = arith.mulf %159, %128 : vector<4x64xf32>
    %169 = arith.mulf %153, %161 : vector<4x64xf32>
    %170 = arith.addf %168, %169 : vector<4x64xf32>
    %171 = math.tanh %170 : vector<4x64xf32>
    %172 = arith.mulf %167, %171 : vector<4x64xf32>
    %c4 = arith.constant 4 : index
    %c0_33 = arith.constant 0 : index
    %c0_34 = arith.constant 0 : index
    %173 = vector.load %arg1[%c4, %c0_33, %c0_34] : memref<8x4x2xf32, #tpu.memory_space<vmem>>, vector<1x4x2xf32>
    %174 = vector.shape_cast %173 : vector<1x4x2xf32> to vector<4x2xf32>
    %cst_35 = arith.constant dense<0.000000e+00> : vector<4x256xf32>
    %175 = tpu.matmul %172, %1, %cst_35 {dimension_numbers = #tpu.dot_dimension_numbers<[1], [0], [0], [1], [0, 0, 1, 1], [], []>} : vector<4x64xf32>, vector<64x256xf32>, vector<4x256xf32> -> vector<4x256xf32>
    %176 = vector.extract_strided_slice %174 {offsets = [0, 0], sizes = [4, 1], strides = [1, 1]} : vector<4x2xf32> to vector<4x1xf32>
    %177 = vector.extract_strided_slice %0 {offsets = [0, 0], sizes = [1, 256], strides = [1, 1]} : vector<2x256xf32> to vector<1x256xf32>
    %178 = vector.broadcast %176 : vector<4x1xf32> to vector<4x256xf32>
    %179 = vector.broadcast %177 : vector<1x256xf32> to vector<4x256xf32>
    %180 = arith.mulf %178, %179 : vector<4x256xf32>
    %181 = arith.addf %175, %180 : vector<4x256xf32>
    %182 = vector.extract_strided_slice %174 {offsets = [0, 1], sizes = [4, 1], strides = [1, 1]} : vector<4x2xf32> to vector<4x1xf32>
    %183 = vector.extract_strided_slice %0 {offsets = [1, 0], sizes = [1, 256], strides = [1, 1]} : vector<2x256xf32> to vector<1x256xf32>
    %184 = vector.broadcast %182 : vector<4x1xf32> to vector<4x256xf32>
    %185 = vector.broadcast %183 : vector<1x256xf32> to vector<4x256xf32>
    %186 = arith.mulf %184, %185 : vector<4x256xf32>
    %187 = arith.addf %181, %186 : vector<4x256xf32>
    %188 = vector.broadcast %2 : vector<1x256xf32> to vector<4x256xf32>
    %189 = arith.addf %187, %188 : vector<4x256xf32>
    %190 = vector.extract_strided_slice %189 {offsets = [0, 0], sizes = [4, 64], strides = [1, 1]} : vector<4x256xf32> to vector<4x64xf32>
    %191 = arith.negf %190 : vector<4x64xf32>
    %192 = math.exp %191 : vector<4x64xf32>
    %cst_36 = arith.constant 1.000000e+00 : f32
    %193 = vector.broadcast %cst_36 : f32 to vector<4x64xf32>
    %194 = arith.addf %193, %192 : vector<4x64xf32>
    %195 = arith.divf %193, %194 : vector<4x64xf32>
    %196 = vector.extract_strided_slice %189 {offsets = [0, 64], sizes = [4, 64], strides = [1, 1]} : vector<4x256xf32> to vector<4x64xf32>
    %197 = arith.negf %196 : vector<4x64xf32>
    %198 = math.exp %197 : vector<4x64xf32>
    %cst_37 = arith.constant 1.000000e+00 : f32
    %199 = vector.broadcast %cst_37 : f32 to vector<4x64xf32>
    %200 = arith.addf %199, %198 : vector<4x64xf32>
    %201 = arith.divf %199, %200 : vector<4x64xf32>
    %202 = vector.extract_strided_slice %189 {offsets = [0, 128], sizes = [4, 64], strides = [1, 1]} : vector<4x256xf32> to vector<4x64xf32>
    %203 = math.tanh %202 : vector<4x64xf32>
    %204 = vector.extract_strided_slice %189 {offsets = [0, 192], sizes = [4, 64], strides = [1, 1]} : vector<4x256xf32> to vector<4x64xf32>
    %205 = arith.negf %204 : vector<4x64xf32>
    %206 = math.exp %205 : vector<4x64xf32>
    %cst_38 = arith.constant 1.000000e+00 : f32
    %207 = vector.broadcast %cst_38 : f32 to vector<4x64xf32>
    %208 = arith.addf %207, %206 : vector<4x64xf32>
    %209 = arith.divf %207, %208 : vector<4x64xf32>
    %210 = arith.mulf %201, %170 : vector<4x64xf32>
    %211 = arith.mulf %195, %203 : vector<4x64xf32>
    %212 = arith.addf %210, %211 : vector<4x64xf32>
    %213 = math.tanh %212 : vector<4x64xf32>
    %214 = arith.mulf %209, %213 : vector<4x64xf32>
    %c5 = arith.constant 5 : index
    %c0_39 = arith.constant 0 : index
    %c0_40 = arith.constant 0 : index
    %215 = vector.load %arg1[%c5, %c0_39, %c0_40] : memref<8x4x2xf32, #tpu.memory_space<vmem>>, vector<1x4x2xf32>
    %216 = vector.shape_cast %215 : vector<1x4x2xf32> to vector<4x2xf32>
    %cst_41 = arith.constant dense<0.000000e+00> : vector<4x256xf32>
    %217 = tpu.matmul %214, %1, %cst_41 {dimension_numbers = #tpu.dot_dimension_numbers<[1], [0], [0], [1], [0, 0, 1, 1], [], []>} : vector<4x64xf32>, vector<64x256xf32>, vector<4x256xf32> -> vector<4x256xf32>
    %218 = vector.extract_strided_slice %216 {offsets = [0, 0], sizes = [4, 1], strides = [1, 1]} : vector<4x2xf32> to vector<4x1xf32>
    %219 = vector.extract_strided_slice %0 {offsets = [0, 0], sizes = [1, 256], strides = [1, 1]} : vector<2x256xf32> to vector<1x256xf32>
    %220 = vector.broadcast %218 : vector<4x1xf32> to vector<4x256xf32>
    %221 = vector.broadcast %219 : vector<1x256xf32> to vector<4x256xf32>
    %222 = arith.mulf %220, %221 : vector<4x256xf32>
    %223 = arith.addf %217, %222 : vector<4x256xf32>
    %224 = vector.extract_strided_slice %216 {offsets = [0, 1], sizes = [4, 1], strides = [1, 1]} : vector<4x2xf32> to vector<4x1xf32>
    %225 = vector.extract_strided_slice %0 {offsets = [1, 0], sizes = [1, 256], strides = [1, 1]} : vector<2x256xf32> to vector<1x256xf32>
    %226 = vector.broadcast %224 : vector<4x1xf32> to vector<4x256xf32>
    %227 = vector.broadcast %225 : vector<1x256xf32> to vector<4x256xf32>
    %228 = arith.mulf %226, %227 : vector<4x256xf32>
    %229 = arith.addf %223, %228 : vector<4x256xf32>
    %230 = vector.broadcast %2 : vector<1x256xf32> to vector<4x256xf32>
    %231 = arith.addf %229, %230 : vector<4x256xf32>
    %232 = vector.extract_strided_slice %231 {offsets = [0, 0], sizes = [4, 64], strides = [1, 1]} : vector<4x256xf32> to vector<4x64xf32>
    %233 = arith.negf %232 : vector<4x64xf32>
    %234 = math.exp %233 : vector<4x64xf32>
    %cst_42 = arith.constant 1.000000e+00 : f32
    %235 = vector.broadcast %cst_42 : f32 to vector<4x64xf32>
    %236 = arith.addf %235, %234 : vector<4x64xf32>
    %237 = arith.divf %235, %236 : vector<4x64xf32>
    %238 = vector.extract_strided_slice %231 {offsets = [0, 64], sizes = [4, 64], strides = [1, 1]} : vector<4x256xf32> to vector<4x64xf32>
    %239 = arith.negf %238 : vector<4x64xf32>
    %240 = math.exp %239 : vector<4x64xf32>
    %cst_43 = arith.constant 1.000000e+00 : f32
    %241 = vector.broadcast %cst_43 : f32 to vector<4x64xf32>
    %242 = arith.addf %241, %240 : vector<4x64xf32>
    %243 = arith.divf %241, %242 : vector<4x64xf32>
    %244 = vector.extract_strided_slice %231 {offsets = [0, 128], sizes = [4, 64], strides = [1, 1]} : vector<4x256xf32> to vector<4x64xf32>
    %245 = math.tanh %244 : vector<4x64xf32>
    %246 = vector.extract_strided_slice %231 {offsets = [0, 192], sizes = [4, 64], strides = [1, 1]} : vector<4x256xf32> to vector<4x64xf32>
    %247 = arith.negf %246 : vector<4x64xf32>
    %248 = math.exp %247 : vector<4x64xf32>
    %cst_44 = arith.constant 1.000000e+00 : f32
    %249 = vector.broadcast %cst_44 : f32 to vector<4x64xf32>
    %250 = arith.addf %249, %248 : vector<4x64xf32>
    %251 = arith.divf %249, %250 : vector<4x64xf32>
    %252 = arith.mulf %243, %212 : vector<4x64xf32>
    %253 = arith.mulf %237, %245 : vector<4x64xf32>
    %254 = arith.addf %252, %253 : vector<4x64xf32>
    %255 = math.tanh %254 : vector<4x64xf32>
    %256 = arith.mulf %251, %255 : vector<4x64xf32>
    %c6 = arith.constant 6 : index
    %c0_45 = arith.constant 0 : index
    %c0_46 = arith.constant 0 : index
    %257 = vector.load %arg1[%c6, %c0_45, %c0_46] : memref<8x4x2xf32, #tpu.memory_space<vmem>>, vector<1x4x2xf32>
    %258 = vector.shape_cast %257 : vector<1x4x2xf32> to vector<4x2xf32>
    %cst_47 = arith.constant dense<0.000000e+00> : vector<4x256xf32>
    %259 = tpu.matmul %256, %1, %cst_47 {dimension_numbers = #tpu.dot_dimension_numbers<[1], [0], [0], [1], [0, 0, 1, 1], [], []>} : vector<4x64xf32>, vector<64x256xf32>, vector<4x256xf32> -> vector<4x256xf32>
    %260 = vector.extract_strided_slice %258 {offsets = [0, 0], sizes = [4, 1], strides = [1, 1]} : vector<4x2xf32> to vector<4x1xf32>
    %261 = vector.extract_strided_slice %0 {offsets = [0, 0], sizes = [1, 256], strides = [1, 1]} : vector<2x256xf32> to vector<1x256xf32>
    %262 = vector.broadcast %260 : vector<4x1xf32> to vector<4x256xf32>
    %263 = vector.broadcast %261 : vector<1x256xf32> to vector<4x256xf32>
    %264 = arith.mulf %262, %263 : vector<4x256xf32>
    %265 = arith.addf %259, %264 : vector<4x256xf32>
    %266 = vector.extract_strided_slice %258 {offsets = [0, 1], sizes = [4, 1], strides = [1, 1]} : vector<4x2xf32> to vector<4x1xf32>
    %267 = vector.extract_strided_slice %0 {offsets = [1, 0], sizes = [1, 256], strides = [1, 1]} : vector<2x256xf32> to vector<1x256xf32>
    %268 = vector.broadcast %266 : vector<4x1xf32> to vector<4x256xf32>
    %269 = vector.broadcast %267 : vector<1x256xf32> to vector<4x256xf32>
    %270 = arith.mulf %268, %269 : vector<4x256xf32>
    %271 = arith.addf %265, %270 : vector<4x256xf32>
    %272 = vector.broadcast %2 : vector<1x256xf32> to vector<4x256xf32>
    %273 = arith.addf %271, %272 : vector<4x256xf32>
    %274 = vector.extract_strided_slice %273 {offsets = [0, 0], sizes = [4, 64], strides = [1, 1]} : vector<4x256xf32> to vector<4x64xf32>
    %275 = arith.negf %274 : vector<4x64xf32>
    %276 = math.exp %275 : vector<4x64xf32>
    %cst_48 = arith.constant 1.000000e+00 : f32
    %277 = vector.broadcast %cst_48 : f32 to vector<4x64xf32>
    %278 = arith.addf %277, %276 : vector<4x64xf32>
    %279 = arith.divf %277, %278 : vector<4x64xf32>
    %280 = vector.extract_strided_slice %273 {offsets = [0, 64], sizes = [4, 64], strides = [1, 1]} : vector<4x256xf32> to vector<4x64xf32>
    %281 = arith.negf %280 : vector<4x64xf32>
    %282 = math.exp %281 : vector<4x64xf32>
    %cst_49 = arith.constant 1.000000e+00 : f32
    %283 = vector.broadcast %cst_49 : f32 to vector<4x64xf32>
    %284 = arith.addf %283, %282 : vector<4x64xf32>
    %285 = arith.divf %283, %284 : vector<4x64xf32>
    %286 = vector.extract_strided_slice %273 {offsets = [0, 128], sizes = [4, 64], strides = [1, 1]} : vector<4x256xf32> to vector<4x64xf32>
    %287 = math.tanh %286 : vector<4x64xf32>
    %288 = vector.extract_strided_slice %273 {offsets = [0, 192], sizes = [4, 64], strides = [1, 1]} : vector<4x256xf32> to vector<4x64xf32>
    %289 = arith.negf %288 : vector<4x64xf32>
    %290 = math.exp %289 : vector<4x64xf32>
    %cst_50 = arith.constant 1.000000e+00 : f32
    %291 = vector.broadcast %cst_50 : f32 to vector<4x64xf32>
    %292 = arith.addf %291, %290 : vector<4x64xf32>
    %293 = arith.divf %291, %292 : vector<4x64xf32>
    %294 = arith.mulf %285, %254 : vector<4x64xf32>
    %295 = arith.mulf %279, %287 : vector<4x64xf32>
    %296 = arith.addf %294, %295 : vector<4x64xf32>
    %297 = math.tanh %296 : vector<4x64xf32>
    %298 = arith.mulf %293, %297 : vector<4x64xf32>
    %c7 = arith.constant 7 : index
    %c0_51 = arith.constant 0 : index
    %c0_52 = arith.constant 0 : index
    %299 = vector.load %arg1[%c7, %c0_51, %c0_52] : memref<8x4x2xf32, #tpu.memory_space<vmem>>, vector<1x4x2xf32>
    %300 = vector.shape_cast %299 : vector<1x4x2xf32> to vector<4x2xf32>
    %cst_53 = arith.constant dense<0.000000e+00> : vector<4x256xf32>
    %301 = tpu.matmul %298, %1, %cst_53 {dimension_numbers = #tpu.dot_dimension_numbers<[1], [0], [0], [1], [0, 0, 1, 1], [], []>} : vector<4x64xf32>, vector<64x256xf32>, vector<4x256xf32> -> vector<4x256xf32>
    %302 = vector.extract_strided_slice %300 {offsets = [0, 0], sizes = [4, 1], strides = [1, 1]} : vector<4x2xf32> to vector<4x1xf32>
    %303 = vector.extract_strided_slice %0 {offsets = [0, 0], sizes = [1, 256], strides = [1, 1]} : vector<2x256xf32> to vector<1x256xf32>
    %304 = vector.broadcast %302 : vector<4x1xf32> to vector<4x256xf32>
    %305 = vector.broadcast %303 : vector<1x256xf32> to vector<4x256xf32>
    %306 = arith.mulf %304, %305 : vector<4x256xf32>
    %307 = arith.addf %301, %306 : vector<4x256xf32>
    %308 = vector.extract_strided_slice %300 {offsets = [0, 1], sizes = [4, 1], strides = [1, 1]} : vector<4x2xf32> to vector<4x1xf32>
    %309 = vector.extract_strided_slice %0 {offsets = [1, 0], sizes = [1, 256], strides = [1, 1]} : vector<2x256xf32> to vector<1x256xf32>
    %310 = vector.broadcast %308 : vector<4x1xf32> to vector<4x256xf32>
    %311 = vector.broadcast %309 : vector<1x256xf32> to vector<4x256xf32>
    %312 = arith.mulf %310, %311 : vector<4x256xf32>
    %313 = arith.addf %307, %312 : vector<4x256xf32>
    %314 = vector.broadcast %2 : vector<1x256xf32> to vector<4x256xf32>
    %315 = arith.addf %313, %314 : vector<4x256xf32>
    %316 = vector.extract_strided_slice %315 {offsets = [0, 0], sizes = [4, 64], strides = [1, 1]} : vector<4x256xf32> to vector<4x64xf32>
    %317 = arith.negf %316 : vector<4x64xf32>
    %318 = math.exp %317 : vector<4x64xf32>
    %cst_54 = arith.constant 1.000000e+00 : f32
    %319 = vector.broadcast %cst_54 : f32 to vector<4x64xf32>
    %320 = arith.addf %319, %318 : vector<4x64xf32>
    %321 = arith.divf %319, %320 : vector<4x64xf32>
    %322 = vector.extract_strided_slice %315 {offsets = [0, 64], sizes = [4, 64], strides = [1, 1]} : vector<4x256xf32> to vector<4x64xf32>
    %323 = arith.negf %322 : vector<4x64xf32>
    %324 = math.exp %323 : vector<4x64xf32>
    %cst_55 = arith.constant 1.000000e+00 : f32
    %325 = vector.broadcast %cst_55 : f32 to vector<4x64xf32>
    %326 = arith.addf %325, %324 : vector<4x64xf32>
    %327 = arith.divf %325, %326 : vector<4x64xf32>
    %328 = vector.extract_strided_slice %315 {offsets = [0, 128], sizes = [4, 64], strides = [1, 1]} : vector<4x256xf32> to vector<4x64xf32>
    %329 = math.tanh %328 : vector<4x64xf32>
    %330 = vector.extract_strided_slice %315 {offsets = [0, 192], sizes = [4, 64], strides = [1, 1]} : vector<4x256xf32> to vector<4x64xf32>
    %331 = arith.negf %330 : vector<4x64xf32>
    %332 = math.exp %331 : vector<4x64xf32>
    %cst_56 = arith.constant 1.000000e+00 : f32
    %333 = vector.broadcast %cst_56 : f32 to vector<4x64xf32>
    %334 = arith.addf %333, %332 : vector<4x64xf32>
    %335 = arith.divf %333, %334 : vector<4x64xf32>
    %336 = arith.mulf %327, %296 : vector<4x64xf32>
    %337 = arith.mulf %321, %329 : vector<4x64xf32>
    %338 = arith.addf %336, %337 : vector<4x64xf32>
    %339 = math.tanh %338 : vector<4x64xf32>
    %340 = arith.mulf %335, %339 : vector<4x64xf32>
    %c0_57 = arith.constant 0 : index
    %c0_58 = arith.constant 0 : index
    %341 = vector.load %arg7[%c0_57, %c0_58] : memref<4x64xf32, #tpu.memory_space<vmem>>, vector<4x64xf32>
    tpu.vector_store %arg7[%c0_57, %c0_58], %340 {strides = array<i32>} : memref<4x64xf32, #tpu.memory_space<vmem>>, vector<4x64xf32>,
    return
  }
  func.func @transform_0(%arg0: i32) -> (i32, i32, i32) {
    %c0_i32 = arith.constant 0 : i32
    %c0_i32_0 = arith.constant 0 : i32
    %c0_i32_1 = arith.constant 0 : i32
    return %c0_i32, %arg0, %c0_i32_0 : i32, i32, i32
  }
  func.func @transform_1(%arg0: i32) -> (i32, i32) {
    %c0_i32 = arith.constant 0 : i32
    %c0_i32_0 = arith.constant 0 : i32
    return %arg0, %c0_i32 : i32, i32
  }
  func.func @transform_2(%arg0: i32) -> (i32, i32) {
    %c0_i32 = arith.constant 0 : i32
    %c0_i32_0 = arith.constant 0 : i32
    return %arg0, %c0_i32 : i32, i32
  }
  func.func @transform_3(%arg0: i32) -> (i32, i32) {
    %c0_i32 = arith.constant 0 : i32
    %c0_i32_0 = arith.constant 0 : i32
    %c0_i32_1 = arith.constant 0 : i32
    return %c0_i32, %c0_i32_0 : i32, i32
  }
  func.func @transform_4(%arg0: i32) -> (i32, i32) {
    %c0_i32 = arith.constant 0 : i32
    %c0_i32_0 = arith.constant 0 : i32
    %c0_i32_1 = arith.constant 0 : i32
    return %c0_i32, %c0_i32_0 : i32, i32
  }
  func.func @transform_5(%arg0: i32) -> (i32, i32) {
    %c0_i32 = arith.constant 0 : i32
    %c0_i32_0 = arith.constant 0 : i32
    %c0_i32_1 = arith.constant 0 : i32
    return %c0_i32, %c0_i32_0 : i32, i32
  }
  func.func @transform_6(%arg0: i32) -> (i32, i32) {
    %c0_i32 = arith.constant 0 : i32
    %c0_i32_0 = arith.constant 0 : i32
    return %arg0, %c0_i32 : i32, i32
  }
}

</mosaic_0001>

<llo_original>
// kernel: tpu_custom_call.1
$region0: #{tpu_custom_call.1}
  #allocation0 [shape = 'u32[]', space=smem, size = 0x4, offset = 0x4, fixed_abs, tag = 'smem constant byte address 0x4 - core index']
  #allocation1 [shape = 'u32[144,128]{1,0:T(1,128)}', space=vmem, size = 0x12000, scoped, tag = 'internal scratch']
  %s0 = inlined_call_operand.vmem [shape: f32[16,4,2], index: 0, kind: input, shape index: {}]
  %s1 = inlined_call_operand.vmem [shape: f32[4,64], index: 1, kind: input, shape index: {}]
  %s2 = inlined_call_operand.vmem [shape: f32[4,64], index: 2, kind: input, shape index: {}]
  %s3 = inlined_call_operand.vmem [shape: f32[2,256], index: 3, kind: input, shape index: {}]
  %s4 = inlined_call_operand.hbm [shape: f32[64,256], index: 4, kind: input, shape index: {}]
  %s5 = inlined_call_operand.vmem [shape: f32[1,256], index: 5, kind: input, shape index: {}]
  %s6 = inlined_call_operand.hbm [shape: f32[4,64], index: 6, kind: output, shape index: {}]
  %s7 = sld [smem:[#allocation0]]
  $region38: #{tpu_custom_call.1} parent=0
    _
  %s9 = ssub.s32 1, %s7
  %s10 = scalar_select 0, %s9, %s7
  $region1: #{tpu_custom_call.1} parent=0
    #allocation2 [shape = 'u8[65536]{0}', space=vmem, size = 0x10000, scoped, tag = 'input window, operand 4, single buffered']
    #allocation3 [shape = 's32[1]{0}', space=sflag, size = 0x4, scoped, tag = 'scoped memory for tpu_custom_call.1']
    #allocation4 [shape = 's32[1]{0}', space=sflag, size = 0x4, scoped, tag = 'scoped memory for tpu_custom_call.1']
    #allocation5 [shape = 'u8[2048]{0}', space=vmem, size = 0x800, scoped, tag = 'output window, operand 0, single buffered']
    %11 = vsyncpa [#allocation3], 0
    %12 = vsyncpa [#allocation4], 0
    // Predicated region
    $region2: #{tpu_custom_call.1} parent=1 // pred_check
      _
    $region3: #{tpu_custom_call.1} parent=1 // pred_check_branch
      %14 = sbr.rel (0) target = $region5
    $region4: #{tpu_custom_call.1} parent=1 // pred_region
      _
    $region5: #{tpu_custom_call.1} parent=1 // pred_fallthru
      _
    // Predicated region
    $region6: #{tpu_custom_call.1} parent=1 // pred_check
      _
    $region7: #{tpu_custom_call.1} parent=1 // pred_check_branch
      %16 = sbr.rel (0) target = $region9
    $region8: #{tpu_custom_call.1} parent=1 // pred_region
      _
    $region9: #{tpu_custom_call.1} parent=1 // pred_fallthru
      _
    // Predicated region
    $region10: #{tpu_custom_call.1} parent=1 // pred_check
      _
    $region11: #{tpu_custom_call.1} parent=1 // pred_check_branch
      %18 = sbr.rel (0) target = $region13
    $region12: #{tpu_custom_call.1} parent=1 // pred_region
      _
    $region13: #{tpu_custom_call.1} parent=1 // pred_fallthru
      _
    // Predicated region
    $region14: #{tpu_custom_call.1} parent=1 // pred_check
      _
    $region15: #{tpu_custom_call.1} parent=1 // pred_check_branch
      %20 = sbr.rel (0) target = $region17
    $region16: #{tpu_custom_call.1} parent=1 // pred_region
      _
    $region17: #{tpu_custom_call.1} parent=1 // pred_fallthru
      _
    // Predicated region
    $region18: #{tpu_custom_call.1} parent=1 // pred_check
      _
    $region19: #{tpu_custom_call.1} parent=1 // pred_check_branch
      %22 = sbr.rel (0) target = $region21
    $region20: #{tpu_custom_call.1} parent=1 // pred_region
      %s24 = ssub.s32 2048, 2048
      %25 = vsyncadd [#allocation3], %s24
      %s26 = sshll.u32 [#allocation2], 4
      %s27 = int_to_ptr.vmem [resolvable:$true] %s26
      %32 = dma.hbm_to_vmem [thread:$0]  %s4, 2048, %s27, [#allocation3], 256, 256, 16
    $region21: #{tpu_custom_call.1} parent=1 // pred_fallthru
      _
    // Predicated region
    $region22: #{tpu_custom_call.1} parent=1 // pred_check
      _
    $region23: #{tpu_custom_call.1} parent=1 // pred_check_branch
      %34 = sbr.rel (0) target = $region25
    $region24: #{tpu_custom_call.1} parent=1 // pred_region
      _
    $region25: #{tpu_custom_call.1} parent=1 // pred_fallthru
      _
    // Predicated region
    $region26: #{tpu_custom_call.1} parent=1 // pred_check
      _
    $region27: #{tpu_custom_call.1} parent=1 // pred_check_branch
      %36 = sbr.rel (0) target = $region29
    $region28: #{tpu_custom_call.1} parent=1 // pred_region
      %37 = dma.done [#allocation3], 2048
    $region29: #{tpu_custom_call.1} parent=1 // pred_fallthru
      _
    %v38 = vld [vmem:[%s3] sm:$0xf]
    %v39 = vld [vmem:[#allocation2] sm:$0xff]
    %v40 = vld [vmem:[#allocation2 + $0x8] sm:$0xff]
    %v41 = vld [vmem:[#allocation2 + $0x10] sm:$0xff]
    %v42 = vld [vmem:[#allocation2 + $0x18] sm:$0xff]
    %v43 = vld [vmem:[#allocation2 + $0x20] sm:$0xff]
    %v44 = vld [vmem:[#allocation2 + $0x28] sm:$0xff]
    %v45 = vld [vmem:[#allocation2 + $0x30] sm:$0xff]
    %v46 = vld [vmem:[#allocation2 + $0x38] sm:$0xff]
    %v47 = vld [vmem:[#allocation2 + $0x40] sm:$0xff]
    %v48 = vld [vmem:[#allocation2 + $0x48] sm:$0xff]
    %v49 = vld [vmem:[#allocation2 + $0x50] sm:$0xff]
    %v50 = vld [vmem:[#allocation2 + $0x58] sm:$0xff]
    %v51 = vld [vmem:[#allocation2 + $0x60] sm:$0xff]
    %v52 = vld [vmem:[#allocation2 + $0x68] sm:$0xff]
    %v53 = vld [vmem:[#allocation2 + $0x70] sm:$0xff]
    %v54 = vld [vmem:[#allocation2 + $0x78] sm:$0xff]
    %v55 = vld [vmem:[%s5] sm:$0x3]
    %v56 = vld [vmem:[%s1] sm:$0xf]
    %v57 = vld [vmem:[%s2] sm:$0xf]
    %v58 = vld [vmem:[%s0] sm:$0xf]
    %60 = vset.pattern.permute.xlu0 0
    %61 = vperm.xlu0 %60, %v58
    %v62 = vpop.permute.xlu0 %61
    %v65 = vlaneseq
    %v66 = vshrl.u32 %v65, 7
    %v67 = vsub.s32 0, %v66
    %v68 = vrot.slane %v38, %v67
    %v69 = vlaneseq
    %v70 = vshrl.u32 %v69, 7
    %v71 = vsub.s32 2, %v70
    %v72 = vrot.slane %v38, %v71
    %v75 = vlaneseq
    %v76 = vshrl.u32 %v75, 7
    %v77 = vsub.s32 0, %v76
    %v78 = vrot.slane %v68, %v77
    %v79 = vlaneseq
    %v80 = vshrl.u32 %v79, 7
    %v81 = vsub.s32 0, %v80
    %v82 = vrot.slane %v72, %v81
    %v83 = vmul.f32 %v62, %v78
    %v84 = vmul.f32 %v62, %v82
    %vm85 = vcmask 523264
    %v87 = vsel %vm85, %v56, 0
    %89 = vmatprep.subr.mxu0 %v40
    %90 = vmatpush1.msra.mxu0 %v39
    %91 = vmatprep.subr.mxu0 %v42
    %92 = vmatpush1.msra.mxu0 %v41
    %93 = vmatprep.subr.mxu0 %v44
    %94 = vmatpush1.msra.mxu0 %v43
    %95 = vmatprep.subr.mxu0 %v46
    %96 = vmatpush1.msra.mxu0 %v45
    %97 = vmatprep.subr.mxu0 %v48
    %98 = vmatpush1.msra.mxu0 %v47
    %99 = vmatprep.subr.mxu0 %v50
    %100 = vmatpush1.msra.mxu0 %v49
    %101 = vmatprep.subr.mxu0 %v52
    %102 = vmatpush1.msra.mxu0 %v51
    %103 = vmatprep.subr.mxu0 %v54
    %104 = vmatpush1.msra.mxu0 %v53
    %105 = vmatprep.subr.mxu0 0.0
    %106 = vmatpush1.msra.mxu0 0.0
    %107 = vmatprep.subr.mxu0 0.0
    %108 = vmatpush1.msra.mxu0 0.0
    %109 = vmatprep.subr.mxu0 0.0
    %110 = vmatpush1.msra.mxu0 0.0
    %111 = vmatprep.subr.mxu0 0.0
    %112 = vmatpush1.msra.mxu0 0.0
    %113 = vmatprep.subr.mxu0 0.0
    %114 = vmatpush1.msra.mxu0 0.0
    %115 = vmatprep.subr.mxu0 0.0
    %116 = vmatpush1.msra.mxu0 0.0
    %117 = vmatprep.subr.mxu0 0.0
    %118 = vmatpush1.msra.mxu0 0.0
    %119 = vmatprep.subr.mxu0 0.0
    %120 = vmatpush1.msra.mxu0 0.0
    %121 = vmatprep.subr.mxu0 0.0
    %122 = vmatpush1.msra.mxu0 0.0
    %123 = vmatprep.subr.mxu0 0.0
    %124 = vmatpush1.msra.mxu0 0.0
    %125 = vmatprep.subr.mxu0 0.0
    %126 = vmatpush1.msra.mxu0 0.0
    %127 = vmatprep.subr.mxu0 0.0
    %128 = vmatpush1.msra.mxu0 0.0
    %129 = vmatprep.subr.mxu0 0.0
    %130 = vmatpush1.msra.mxu0 0.0
    %131 = vmatprep.subr.mxu0 0.0
    %132 = vmatpush1.msra.mxu0 0.0
    %133 = vmatprep.subr.mxu0 0.0
    %134 = vmatpush1.msra.mxu0 0.0
    %135 = vmatprep.subr.mxu0 0.0
    %136 = vmatpush1.msra.mxu0 0.0
    %137 = vmatprep.subr.mxu0 0.0
    %138 = vmatpush1.msra.mxu0 0.0
    %139 = vmatprep.subr.mxu0 0.0
    %140 = vmatpush1.msra.mxu0 0.0
    %141 = vmatprep.subr.mxu0 0.0
    %142 = vmatpush1.msra.mxu0 0.0
    %143 = vmatprep.subr.mxu0 0.0
    %144 = vmatpush1.msra.mxu0 0.0
    %145 = vmatprep.subr.mxu0 0.0
    %146 = vmatpush1.msra.mxu0 0.0
    %147 = vmatprep.subr.mxu0 0.0
    %148 = vmatpush1.msra.mxu0 0.0
    %149 = vmatprep.subr.mxu0 0.0
    %150 = vmatpush1.msra.mxu0 0.0
    %151 = vmatprep.subr.mxu0 0.0
    %152 = vmatpush1.msra.mxu0 0.0
    %153 = vmatprep.mubr.f32.mxu0 0.0
    %154 = vmatmul.mubr.f32.gmra.mrb[0].mxu0 %v87
    %v155 = vpop.f32.mrb[0].mxu0
    %v156 = vadd.f32 %v83, %v155
    %v157 = vpop.f32.mrb[0].mxu0
    %v158 = vadd.f32 %v84, %v157
    %159 = vdwg.mxu0
    %160 = vset.pattern.permute.xlu0 1
    %161 = vperm.xlu0 %160, %v58
    %v162 = vpop.permute.xlu0 %161
    %v164 = vlaneseq
    %v165 = vshrl.u32 %v164, 7
    %v166 = vsub.s32 1, %v165
    %v167 = vrot.slane %v38, %v166
    %v168 = vlaneseq
    %v169 = vshrl.u32 %v168, 7
    %v170 = vsub.s32 3, %v169
    %v171 = vrot.slane %v38, %v170
    %v174 = vlaneseq
    %v175 = vshrl.u32 %v174, 7
    %v176 = vsub.s32 1, %v175
    %v177 = vrot.slane %v167, %v176
    %v178 = vlaneseq
    %v179 = vshrl.u32 %v178, 7
    %v180 = vsub.s32 1, %v179
    %v181 = vrot.slane %v171, %v180
    %v182 = vmul.f32 %v162, %v177
    %v183 = vmul.f32 %v162, %v181
    %v184 = vadd.f32 %v156, %v182
    %v185 = vadd.f32 %v158, %v183
    %v187 = vlaneseq
    %v188 = vshrl.u32 %v187, 7
    %v189 = vsub.s32 0, %v188
    %v190 = vrot.slane %v55, %v189
    %v191 = vlaneseq
    %v192 = vshrl.u32 %v191, 7
    %v193 = vsub.s32 1, %v192
    %v194 = vrot.slane %v55, %v193
    %v197 = vadd.f32 %v184, %v190
    %v198 = vadd.f32 %v185, %v194
    %v199 = vxor.u32 %v197, 2147483648
    %v200 = vmul.f32 %v199, 1.442695
    %v201 = vpow.pop %v200
    %v202 = vadd.f32 %v201, 1.0
    %v203 = vrcp.pop %v202
    %v204 = vmul.f32 1.0, %v203
    %v205 = vtanh.pop %v198
    %v206 = vxor.u32 %v198, 2147483648
    %v207 = vmul.f32 %v206, 1.442695
    %v208 = vpow.pop %v207
    %v209 = vadd.f32 %v208, 1.0
    %v210 = vrcp.pop %v209
    %v211 = vmul.f32 1.0, %v210
    %213 = vrot.lane.b32.xlu0 %v57, 64
    %v214 = vpop.permute.xlu0 %213
    %v216 = vmul.f32 %v204, %v214
    %v217 = vmul.f32 %v204, %v205
    %219 = vrot.lane.b32.xlu0 %v217, 64
    %v220 = vpop.permute.xlu0 %219
    %v222 = vadd.f32 %v216, %v220
    %v223 = vtanh.pop %v222
    %v224 = vmul.f32 %v211, %v223
    %s225 = scalar_lea.vmem %s0, 4
    %v226 = vld [vmem:[%s225] sm:$0xf]
    %228 = vset.pattern.permute.xlu0 0
    %229 = vperm.xlu0 %228, %v226
    %v230 = vpop.permute.xlu0 %229
    %v232 = vmul.f32 %v230, %v78
    %v233 = vmul.f32 %v230, %v82
    %235 = vrot.lane.b32.xlu0 %v224, 64
    %v236 = vpop.permute.xlu0 %235
    %v237 = vsel %vm85, %v236, 0
    %239 = vmatprep.subr.mxu0 %v40
    %240 = vmatpush1.msra.mxu0 %v39
    %241 = vmatprep.subr.mxu0 %v42
    %242 = vmatpush1.msra.mxu0 %v41
    %243 = vmatprep.subr.mxu0 %v44
    %244 = vmatpush1.msra.mxu0 %v43
    %245 = vmatprep.subr.mxu0 %v46
    %246 = vmatpush1.msra.mxu0 %v45
    %247 = vmatprep.subr.mxu0 %v48
    %248 = vmatpush1.msra.mxu0 %v47
    %249 = vmatprep.subr.mxu0 %v50
    %250 = vmatpush1.msra.mxu0 %v49
    %251 = vmatprep.subr.mxu0 %v52
    %252 = vmatpush1.msra.mxu0 %v51
    %253 = vmatprep.subr.mxu0 %v54
    %254 = vmatpush1.msra.mxu0 %v53
    %255 = vmatprep.subr.mxu0 0.0
    %256 = vmatpush1.msra.mxu0 0.0
    %257 = vmatprep.subr.mxu0 0.0
    %258 = vmatpush1.msra.mxu0 0.0
    %259 = vmatprep.subr.mxu0 0.0
    %260 = vmatpush1.msra.mxu0 0.0
    %261 = vmatprep.subr.mxu0 0.0
    %262 = vmatpush1.msra.mxu0 0.0
    %263 = vmatprep.subr.mxu0 0.0
    %264 = vmatpush1.msra.mxu0 0.0
    %265 = vmatprep.subr.mxu0 0.0
    %266 = vmatpush1.msra.mxu0 0.0
    %267 = vmatprep.subr.mxu0 0.0
    %268 = vmatpush1.msra.mxu0 0.0
    %269 = vmatprep.subr.mxu0 0.0
    %270 = vmatpush1.msra.mxu0 0.0
    %271 = vmatprep.subr.mxu0 0.0
    %272 = vmatpush1.msra.mxu0 0.0
    %273 = vmatprep.subr.mxu0 0.0
    %274 = vmatpush1.msra.mxu0 0.0
    %275 = vmatprep.subr.mxu0 0.0
    %276 = vmatpush1.msra.mxu0 0.0
    %277 = vmatprep.subr.mxu0 0.0
    %278 = vmatpush1.msra.mxu0 0.0
    %279 = vmatprep.subr.mxu0 0.0
    %280 = vmatpush1.msra.mxu0 0.0
    %281 = vmatprep.subr.mxu0 0.0
    %282 = vmatpush1.msra.mxu0 0.0
    %283 = vmatprep.subr.mxu0 0.0
    %284 = vmatpush1.msra.mxu0 0.0
    %285 = vmatprep.subr.mxu0 0.0
    %286 = vmatpush1.msra.mxu0 0.0
    %287 = vmatprep.subr.mxu0 0.0
    %288 = vmatpush1.msra.mxu0 0.0
    %289 = vmatprep.subr.mxu0 0.0
    %290 = vmatpush1.msra.mxu0 0.0
    %291 = vmatprep.subr.mxu0 0.0
    %292 = vmatpush1.msra.mxu0 0.0
    %293 = vmatprep.subr.mxu0 0.0
    %294 = vmatpush1.msra.mxu0 0.0
    %295 = vmatprep.subr.mxu0 0.0
    %296 = vmatpush1.msra.mxu0 0.0
    %297 = vmatprep.subr.mxu0 0.0
    %298 = vmatpush1.msra.mxu0 0.0
    %299 = vmatprep.subr.mxu0 0.0
    %300 = vmatpush1.msra.mxu0 0.0
    %301 = vmatprep.subr.mxu0 0.0
    %302 = vmatpush1.msra.mxu0 0.0
    %303 = vmatprep.mubr.f32.mxu0 0.0
    %304 = vmatmul.mubr.f32.gmra.mrb[0].mxu0 %v237
    %v305 = vpop.f32.mrb[0].mxu0
    %v306 = vadd.f32 %v232, %v305
    %v307 = vpop.f32.mrb[0].mxu0
    %v308 = vadd.f32 %v233, %v307
    %309 = vdwg.mxu0
    %310 = vset.pattern.permute.xlu0 1
    %311 = vperm.xlu0 %310, %v226
    %v312 = vpop.permute.xlu0 %311
    %v314 = vmul.f32 %v312, %v177
    %v315 = vmul.f32 %v312, %v181
    %v316 = vadd.f32 %v306, %v314
    %v317 = vadd.f32 %v308, %v315
    %v318 = vadd.f32 %v316, %v190
    %v319 = vadd.f32 %v317, %v194
    %v320 = vxor.u32 %v318, 2147483648
    %v321 = vmul.f32 %v320, 1.442695
    %v322 = vpow.pop %v321
    %v323 = vadd.f32 %v322, 1.0
    %v324 = vrcp.pop %v323
    %v325 = vmul.f32 1.0, %v324
    %v326 = vtanh.pop %v319
    %v327 = vxor.u32 %v319, 2147483648
    %v328 = vmul.f32 %v327, 1.442695
    %v329 = vpow.pop %v328
    %v330 = vadd.f32 %v329, 1.0
    %v331 = vrcp.pop %v330
    %v332 = vmul.f32 1.0, %v331
    %v333 = vmul.f32 %v325, %v222
    %v334 = vmul.f32 %v325, %v326
    %336 = vrot.lane.b32.xlu0 %v334, 64
    %v337 = vpop.permute.xlu0 %336
    %v339 = vadd.f32 %v333, %v337
    %v340 = vtanh.pop %v339
    %v341 = vmul.f32 %v332, %v340
    %s342 = scalar_lea.vmem %s0, 8
    %v343 = vld [vmem:[%s342] sm:$0xf]
    %345 = vset.pattern.permute.xlu0 0
    %346 = vperm.xlu0 %345, %v343
    %v347 = vpop.permute.xlu0 %346
    %v349 = vmul.f32 %v347, %v78
    %v350 = vmul.f32 %v347, %v82
    %352 = vrot.lane.b32.xlu0 %v341, 64
    %v353 = vpop.permute.xlu0 %352
    %v354 = vsel %vm85, %v353, 0
    %356 = vmatprep.subr.mxu0 %v40
    %357 = vmatpush1.msra.mxu0 %v39
    %358 = vmatprep.subr.mxu0 %v42
    %359 = vmatpush1.msra.mxu0 %v41
    %360 = vmatprep.subr.mxu0 %v44
    %361 = vmatpush1.msra.mxu0 %v43
    %362 = vmatprep.subr.mxu0 %v46
    %363 = vmatpush1.msra.mxu0 %v45
    %364 = vmatprep.subr.mxu0 %v48
    %365 = vmatpush1.msra.mxu0 %v47
    %366 = vmatprep.subr.mxu0 %v50
    %367 = vmatpush1.msra.mxu0 %v49
    %368 = vmatprep.subr.mxu0 %v52
    %369 = vmatpush1.msra.mxu0 %v51
    %370 = vmatprep.subr.mxu0 %v54
    %371 = vmatpush1.msra.mxu0 %v53
    %372 = vmatprep.subr.mxu0 0.0
    %373 = vmatpush1.msra.mxu0 0.0
    %374 = vmatprep.subr.mxu0 0.0
    %375 = vmatpush1.msra.mxu0 0.0
    %376 = vmatprep.subr.mxu0 0.0
    %377 = vmatpush1.msra.mxu0 0.0
    %378 = vmatprep.subr.mxu0 0.0
    %379 = vmatpush1.msra.mxu0 0.0
    %380 = vmatprep.subr.mxu0 0.0
    %381 = vmatpush1.msra.mxu0 0.0
    %382 = vmatprep.subr.mxu0 0.0
    %383 = vmatpush1.msra.mxu0 0.0
    %384 = vmatprep.subr.mxu0 0.0
    %385 = vmatpush1.msra.mxu0 0.0
    %386 = vmatprep.subr.mxu0 0.0
    %387 = vmatpush1.msra.mxu0 0.0
    %388 = vmatprep.subr.mxu0 0.0
    %389 = vmatpush1.msra.mxu0 0.0
    %390 = vmatprep.subr.mxu0 0.0
    %391 = vmatpush1.msra.mxu0 0.0
    %392 = vmatprep.subr.mxu0 0.0
    %393 = vmatpush1.msra.mxu0 0.0
    %394 = vmatprep.subr.mxu0 0.0
    %395 = vmatpush1.msra.mxu0 0.0
    %396 = vmatprep.subr.mxu0 0.0
    %397 = vmatpush1.msra.mxu0 0.0
    %398 = vmatprep.subr.mxu0 0.0
    %399 = vmatpush1.msra.mxu0 0.0
    %400 = vmatprep.subr.mxu0 0.0
    %401 = vmatpush1.msra.mxu0 0.0
    %402 = vmatprep.subr.mxu0 0.0
    %403 = vmatpush1.msra.mxu0 0.0
    %404 = vmatprep.subr.mxu0 0.0
    %405 = vmatpush1.msra.mxu0 0.0
    %406 = vmatprep.subr.mxu0 0.0
    %407 = vmatpush1.msra.mxu0 0.0
    %408 = vmatprep.subr.mxu0 0.0
    %409 = vmatpush1.msra.mxu0 0.0
    %410 = vmatprep.subr.mxu0 0.0
    %411 = vmatpush1.msra.mxu0 0.0
    %412 = vmatprep.subr.mxu0 0.0
    %413 = vmatpush1.msra.mxu0 0.0
    %414 = vmatprep.subr.mxu0 0.0
    %415 = vmatpush1.msra.mxu0 0.0
    %416 = vmatprep.subr.mxu0 0.0
    %417 = vmatpush1.msra.mxu0 0.0
    %418 = vmatprep.subr.mxu0 0.0
    %419 = vmatpush1.msra.mxu0 0.0
    %420 = vmatprep.mubr.f32.mxu0 0.0
    %421 = vmatmul.mubr.f32.gmra.mrb[0].mxu0 %v354
    %v422 = vpop.f32.mrb[0].mxu0
    %v423 = vadd.f32 %v349, %v422
    %v424 = vpop.f32.mrb[0].mxu0
    %v425 = vadd.f32 %v350, %v424
    %426 = vdwg.mxu0
    %427 = vset.pattern.permute.xlu0 1
    %428 = vperm.xlu0 %427, %v343
    %v429 = vpop.permute.xlu0 %428
    %v431 = vmul.f32 %v429, %v177
    %v432 = vmul.f32 %v429, %v181
    %v433 = vadd.f32 %v423, %v431
    %v434 = vadd.f32 %v425, %v432
    %v435 = vadd.f32 %v433, %v190
    %v436 = vadd.f32 %v434, %v194
    %v437 = vxor.u32 %v435, 2147483648
    %v438 = vmul.f32 %v437, 1.442695
    %v439 = vpow.pop %v438
    %v440 = vadd.f32 %v439, 1.0
    %v441 = vrcp.pop %v440
    %v442 = vmul.f32 1.0, %v441
    %v443 = vtanh.pop %v436
    %v444 = vxor.u32 %v436, 2147483648
    %v445 = vmul.f32 %v444, 1.442695
    %v446 = vpow.pop %v445
    %v447 = vadd.f32 %v446, 1.0
    %v448 = vrcp.pop %v447
    %v449 = vmul.f32 1.0, %v448
    %v450 = vmul.f32 %v442, %v339
    %v451 = vmul.f32 %v442, %v443
    %453 = vrot.lane.b32.xlu0 %v451, 64
    %v454 = vpop.permute.xlu0 %453
    %v456 = vadd.f32 %v450, %v454
    %v457 = vtanh.pop %v456
    %v458 = vmul.f32 %v449, %v457
    %s459 = scalar_lea.vmem %s0, 12
    %v460 = vld [vmem:[%s459] sm:$0xf]
    %462 = vset.pattern.permute.xlu0 0
    %463 = vperm.xlu0 %462, %v460
    %v464 = vpop.permute.xlu0 %463
    %v466 = vmul.f32 %v464, %v78
    %v467 = vmul.f32 %v464, %v82
    %469 = vrot.lane.b32.xlu0 %v458, 64
    %v470 = vpop.permute.xlu0 %469
    %v471 = vsel %vm85, %v470, 0
    %473 = vmatprep.subr.mxu0 %v40
    %474 = vmatpush1.msra.mxu0 %v39
    %475 = vmatprep.subr.mxu0 %v42
    %476 = vmatpush1.msra.mxu0 %v41
    %477 = vmatprep.subr.mxu0 %v44
    %478 = vmatpush1.msra.mxu0 %v43
    %479 = vmatprep.subr.mxu0 %v46
    %480 = vmatpush1.msra.mxu0 %v45
    %481 = vmatprep.subr.mxu0 %v48
    %482 = vmatpush1.msra.mxu0 %v47
    %483 = vmatprep.subr.mxu0 %v50
    %484 = vmatpush1.msra.mxu0 %v49
    %485 = vmatprep.subr.mxu0 %v52
    %486 = vmatpush1.msra.mxu0 %v51
    %487 = vmatprep.subr.mxu0 %v54
    %488 = vmatpush1.msra.mxu0 %v53
    %489 = vmatprep.subr.mxu0 0.0
    %490 = vmatpush1.msra.mxu0 0.0
    %491 = vmatprep.subr.mxu0 0.0
    %492 = vmatpush1.msra.mxu0 0.0
    %493 = vmatprep.subr.mxu0 0.0
    %494 = vmatpush1.msra.mxu0 0.0
    %495 = vmatprep.subr.mxu0 0.0
    %496 = vmatpush1.msra.mxu0 0.0
    %497 = vmatprep.subr.mxu0 0.0
    %498 = vmatpush1.msra.mxu0 0.0
    %499 = vmatprep.subr.mxu0 0.0
    %500 = vmatpush1.msra.mxu0 0.0
    %501 = vmatprep.subr.mxu0 0.0
    %502 = vmatpush1.msra.mxu0 0.0
    %503 = vmatprep.subr.mxu0 0.0
    %504 = vmatpush1.msra.mxu0 0.0
    %505 = vmatprep.subr.mxu0 0.0
    %506 = vmatpush1.msra.mxu0 0.0
    %507 = vmatprep.subr.mxu0 0.0
    %508 = vmatpush1.msra.mxu0 0.0
    %509 = vmatprep.subr.mxu0 0.0
    %510 = vmatpush1.msra.mxu0 0.0
    %511 = vmatprep.subr.mxu0 0.0
    %512 = vmatpush1.msra.mxu0 0.0
    %513 = vmatprep.subr.mxu0 0.0
    %514 = vmatpush1.msra.mxu0 0.0
    %515 = vmatprep.subr.mxu0 0.0
    %516 = vmatpush1.msra.mxu0 0.0
    %517 = vmatprep.subr.mxu0 0.0
    %518 = vmatpush1.msra.mxu0 0.0
    %519 = vmatprep.subr.mxu0 0.0
    %520 = vmatpush1.msra.mxu0 0.0
    %521 = vmatprep.subr.mxu0 0.0
    %522 = vmatpush1.msra.mxu0 0.0
    %523 = vmatprep.subr.mxu0 0.0
    %524 = vmatpush1.msra.mxu0 0.0
    %525 = vmatprep.subr.mxu0 0.0
    %526 = vmatpush1.msra.mxu0 0.0
    %527 = vmatprep.subr.mxu0 0.0
    %528 = vmatpush1.msra.mxu0 0.0
    %529 = vmatprep.subr.mxu0 0.0
    %530 = vmatpush1.msra.mxu0 0.0
    %531 = vmatprep.subr.mxu0 0.0
    %532 = vmatpush1.msra.mxu0 0.0
    %533 = vmatprep.subr.mxu0 0.0
    %534 = vmatpush1.msra.mxu0 0.0
    %535 = vmatprep.subr.mxu0 0.0
    %536 = vmatpush1.msra.mxu0 0.0
    %537 = vmatprep.mubr.f32.mxu0 0.0
    %538 = vmatmul.mubr.f32.gmra.mrb[0].mxu0 %v471
    %v539 = vpop.f32.mrb[0].mxu0
    %v540 = vadd.f32 %v466, %v539
    %v541 = vpop.f32.mrb[0].mxu0
    %v542 = vadd.f32 %v467, %v541
    %543 = vdwg.mxu0
    %544 = vset.pattern.permute.xlu0 1
    %545 = vperm.xlu0 %544, %v460
    %v546 = vpop.permute.xlu0 %545
    %v548 = vmul.f32 %v546, %v177
    %v549 = vmul.f32 %v546, %v181
    %v550 = vadd.f32 %v540, %v548
    %v551 = vadd.f32 %v542, %v549
    %v552 = vadd.f32 %v550, %v190
    %v553 = vadd.f32 %v551, %v194
    %v554 = vxor.u32 %v552, 2147483648
    %v555 = vmul.f32 %v554, 1.442695
    %v556 = vpow.pop %v555
    %v557 = vadd.f32 %v556, 1.0
    %v558 = vrcp.pop %v557
    %v559 = vmul.f32 1.0, %v558
    %v560 = vtanh.pop %v553
    %v561 = vxor.u32 %v553, 2147483648
    %v562 = vmul.f32 %v561, 1.442695
    %v563 = vpow.pop %v562
    %v564 = vadd.f32 %v563, 1.0
    %v565 = vrcp.pop %v564
    %v566 = vmul.f32 1.0, %v565
    %v567 = vmul.f32 %v559, %v456
    %v568 = vmul.f32 %v559, %v560
    %570 = vrot.lane.b32.xlu0 %v568, 64
    %v571 = vpop.permute.xlu0 %570
    %v573 = vadd.f32 %v567, %v571
    %v574 = vtanh.pop %v573
    %v575 = vmul.f32 %v566, %v574
    %s576 = scalar_lea.vmem %s0, 16
    %v577 = vld [vmem:[%s576] sm:$0xf]
    %579 = vset.pattern.permute.xlu0 0
    %580 = vperm.xlu0 %579, %v577
    %v581 = vpop.permute.xlu0 %580
    %v583 = vmul.f32 %v581, %v78
    %v584 = vmul.f32 %v581, %v82
    %586 = vrot.lane.b32.xlu0 %v575, 64
    %v587 = vpop.permute.xlu0 %586
    %v588 = vsel %vm85, %v587, 0
    %590 = vmatprep.subr.mxu0 %v40
    %591 = vmatpush1.msra.mxu0 %v39
    %592 = vmatprep.subr.mxu0 %v42
    %593 = vmatpush1.msra.mxu0 %v41
    %594 = vmatprep.subr.mxu0 %v44
    %595 = vmatpush1.msra.mxu0 %v43
    %596 = vmatprep.subr.mxu0 %v46
    %597 = vmatpush1.msra.mxu0 %v45
    %598 = vmatprep.subr.mxu0 %v48
    %599 = vmatpush1.msra.mxu0 %v47
    %600 = vmatprep.subr.mxu0 %v50
    %601 = vmatpush1.msra.mxu0 %v49
    %602 = vmatprep.subr.mxu0 %v52
    %603 = vmatpush1.msra.mxu0 %v51
    %604 = vmatprep.subr.mxu0 %v54
    %605 = vmatpush1.msra.mxu0 %v53
    %606 = vmatprep.subr.mxu0 0.0
    %607 = vmatpush1.msra.mxu0 0.0
    %608 = vmatprep.subr.mxu0 0.0
    %609 = vmatpush1.msra.mxu0 0.0
    %610 = vmatprep.subr.mxu0 0.0
    %611 = vmatpush1.msra.mxu0 0.0
    %612 = vmatprep.subr.mxu0 0.0
    %613 = vmatpush1.msra.mxu0 0.0
    %614 = vmatprep.subr.mxu0 0.0
    %615 = vmatpush1.msra.mxu0 0.0
    %616 = vmatprep.subr.mxu0 0.0
    %617 = vmatpush1.msra.mxu0 0.0
    %618 = vmatprep.subr.mxu0 0.0
    %619 = vmatpush1.msra.mxu0 0.0
    %620 = vmatprep.subr.mxu0 0.0
    %621 = vmatpush1.msra.mxu0 0.0
    %622 = vmatprep.subr.mxu0 0.0
    %623 = vmatpush1.msra.mxu0 0.0
    %624 = vmatprep.subr.mxu0 0.0
    %625 = vmatpush1.msra.mxu0 0.0
    %626 = vmatprep.subr.mxu0 0.0
    %627 = vmatpush1.msra.mxu0 0.0
    %628 = vmatprep.subr.mxu0 0.0
    %629 = vmatpush1.msra.mxu0 0.0
    %630 = vmatprep.subr.mxu0 0.0
    %631 = vmatpush1.msra.mxu0 0.0
    %632 = vmatprep.subr.mxu0 0.0
    %633 = vmatpush1.msra.mxu0 0.0
    %634 = vmatprep.subr.mxu0 0.0
    %635 = vmatpush1.msra.mxu0 0.0
    %636 = vmatprep.subr.mxu0 0.0
    %637 = vmatpush1.msra.mxu0 0.0
    %638 = vmatprep.subr.mxu0 0.0
    %639 = vmatpush1.msra.mxu0 0.0
    %640 = vmatprep.subr.mxu0 0.0
    %641 = vmatpush1.msra.mxu0 0.0
    %642 = vmatprep.subr.mxu0 0.0
    %643 = vmatpush1.msra.mxu0 0.0
    %644 = vmatprep.subr.mxu0 0.0
    %645 = vmatpush1.msra.mxu0 0.0
    %646 = vmatprep.subr.mxu0 0.0
    %647 = vmatpush1.msra.mxu0 0.0
    %648 = vmatprep.subr.mxu0 0.0
    %649 = vmatpush1.msra.mxu0 0.0
    %650 = vmatprep.subr.mxu0 0.0
    %651 = vmatpush1.msra.mxu0 0.0
    %652 = vmatprep.subr.mxu0 0.0
    %653 = vmatpush1.msra.mxu0 0.0
    %654 = vmatprep.mubr.f32.mxu0 0.0
    %655 = vmatmul.mubr.f32.gmra.mrb[0].mxu0 %v588
    %v656 = vpop.f32.mrb[0].mxu0
    %v657 = vadd.f32 %v583, %v656
    %v658 = vpop.f32.mrb[0].mxu0
    %v659 = vadd.f32 %v584, %v658
    %660 = vdwg.mxu0
    %661 = vset.pattern.permute.xlu0 1
    %662 = vperm.xlu0 %661, %v577
    %v663 = vpop.permute.xlu0 %662
    %v665 = vmul.f32 %v663, %v177
    %v666 = vmul.f32 %v663, %v181
    %v667 = vadd.f32 %v657, %v665
    %v668 = vadd.f32 %v659, %v666
    %v669 = vadd.f32 %v667, %v190
    %v670 = vadd.f32 %v668, %v194
    %v671 = vxor.u32 %v669, 2147483648
    %v672 = vmul.f32 %v671, 1.442695
    %v673 = vpow.pop %v672
    %v674 = vadd.f32 %v673, 1.0
    %v675 = vrcp.pop %v674
    %v676 = vmul.f32 1.0, %v675
    %v677 = vtanh.pop %v670
    %v678 = vxor.u32 %v670, 2147483648
    %v679 = vmul.f32 %v678, 1.442695
    %v680 = vpow.pop %v679
    %v681 = vadd.f32 %v680, 1.0
    %v682 = vrcp.pop %v681
    %v683 = vmul.f32 1.0, %v682
    %v684 = vmul.f32 %v676, %v573
    %v685 = vmul.f32 %v676, %v677
    %687 = vrot.lane.b32.xlu0 %v685, 64
    %v688 = vpop.permute.xlu0 %687
    %v690 = vadd.f32 %v684, %v688
    %v691 = vtanh.pop %v690
    %v692 = vmul.f32 %v683, %v691
    %s693 = scalar_lea.vmem %s0, 20
    %v694 = vld [vmem:[%s693] sm:$0xf]
    %696 = vset.pattern.permute.xlu0 0
    %697 = vperm.xlu0 %696, %v694
    %v698 = vpop.permute.xlu0 %697
    %v700 = vmul.f32 %v698, %v78
    %v701 = vmul.f32 %v698, %v82
    %703 = vrot.lane.b32.xlu0 %v692, 64
    %v704 = vpop.permute.xlu0 %703
    %v705 = vsel %vm85, %v704, 0
    %707 = vmatprep.subr.mxu0 %v40
    %708 = vmatpush1.msra.mxu0 %v39
    %709 = vmatprep.subr.mxu0 %v42
    %710 = vmatpush1.msra.mxu0 %v41
    %711 = vmatprep.subr.mxu0 %v44
    %712 = vmatpush1.msra.mxu0 %v43
    %713 = vmatprep.subr.mxu0 %v46
    %714 = vmatpush1.msra.mxu0 %v45
    %715 = vmatprep.subr.mxu0 %v48
    %716 = vmatpush1.msra.mxu0 %v47
    %717 = vmatprep.subr.mxu0 %v50
    %718 = vmatpush1.msra.mxu0 %v49
    %719 = vmatprep.subr.mxu0 %v52
    %720 = vmatpush1.msra.mxu0 %v51
    %721 = vmatprep.subr.mxu0 %v54
    %722 = vmatpush1.msra.mxu0 %v53
    %723 = vmatprep.subr.mxu0 0.0
    %724 = vmatpush1.msra.mxu0 0.0
    %725 = vmatprep.subr.mxu0 0.0
    %726 = vmatpush1.msra.mxu0 0.0
    %727 = vmatprep.subr.mxu0 0.0
    %728 = vmatpush1.msra.mxu0 0.0
    %729 = vmatprep.subr.mxu0 0.0
    %730 = vmatpush1.msra.mxu0 0.0
    %731 = vmatprep.subr.mxu0 0.0
    %732 = vmatpush1.msra.mxu0 0.0
    %733 = vmatprep.subr.mxu0 0.0
    %734 = vmatpush1.msra.mxu0 0.0
    %735 = vmatprep.subr.mxu0 0.0
    %736 = vmatpush1.msra.mxu0 0.0
    %737 = vmatprep.subr.mxu0 0.0
    %738 = vmatpush1.msra.mxu0 0.0
    %739 = vmatprep.subr.mxu0 0.0
    %740 = vmatpush1.msra.mxu0 0.0
    %741 = vmatprep.subr.mxu0 0.0
    %742 = vmatpush1.msra.mxu0 0.0
    %743 = vmatprep.subr.mxu0 0.0
    %744 = vmatpush1.msra.mxu0 0.0
    %745 = vmatprep.subr.mxu0 0.0
    %746 = vmatpush1.msra.mxu0 0.0
    %747 = vmatprep.subr.mxu0 0.0
    %748 = vmatpush1.msra.mxu0 0.0
    %749 = vmatprep.subr.mxu0 0.0
    %750 = vmatpush1.msra.mxu0 0.0
    %751 = vmatprep.subr.mxu0 0.0
    %752 = vmatpush1.msra.mxu0 0.0
    %753 = vmatprep.subr.mxu0 0.0
    %754 = vmatpush1.msra.mxu0 0.0
    %755 = vmatprep.subr.mxu0 0.0
    %756 = vmatpush1.msra.mxu0 0.0
    %757 = vmatprep.subr.mxu0 0.0
    %758 = vmatpush1.msra.mxu0 0.0
    %759 = vmatprep.subr.mxu0 0.0
    %760 = vmatpush1.msra.mxu0 0.0
    %761 = vmatprep.subr.mxu0 0.0
    %762 = vmatpush1.msra.mxu0 0.0
    %763 = vmatprep.subr.mxu0 0.0
    %764 = vmatpush1.msra.mxu0 0.0
    %765 = vmatprep.subr.mxu0 0.0
    %766 = vmatpush1.msra.mxu0 0.0
    %767 = vmatprep.subr.mxu0 0.0
    %768 = vmatpush1.msra.mxu0 0.0
    %769 = vmatprep.subr.mxu0 0.0
    %770 = vmatpush1.msra.mxu0 0.0
    %771 = vmatprep.mubr.f32.mxu0 0.0
    %772 = vmatmul.mubr.f32.gmra.mrb[0].mxu0 %v705
    %v773 = vpop.f32.mrb[0].mxu0
    %v774 = vadd.f32 %v700, %v773
    %v775 = vpop.f32.mrb[0].mxu0
    %v776 = vadd.f32 %v701, %v775
    %777 = vdwg.mxu0
    %778 = vset.pattern.permute.xlu0 1
    %779 = vperm.xlu0 %778, %v694
    %v780 = vpop.permute.xlu0 %779
    %v782 = vmul.f32 %v780, %v177
    %v783 = vmul.f32 %v780, %v181
    %v784 = vadd.f32 %v774, %v782
    %v785 = vadd.f32 %v776, %v783
    %v786 = vadd.f32 %v784, %v190
    %v787 = vadd.f32 %v785, %v194
    %v788 = vxor.u32 %v786, 2147483648
    %v789 = vmul.f32 %v788, 1.442695
    %v790 = vpow.pop %v789
    %v791 = vadd.f32 %v790, 1.0
    %v792 = vrcp.pop %v791
    %v793 = vmul.f32 1.0, %v792
    %v794 = vtanh.pop %v787
    %v795 = vxor.u32 %v787, 2147483648
    %v796 = vmul.f32 %v795, 1.442695
    %v797 = vpow.pop %v796
    %v798 = vadd.f32 %v797, 1.0
    %v799 = vrcp.pop %v798
    %v800 = vmul.f32 1.0, %v799
    %v801 = vmul.f32 %v793, %v690
    %v802 = vmul.f32 %v793, %v794
    %804 = vrot.lane.b32.xlu0 %v802, 64
    %v805 = vpop.permute.xlu0 %804
    %v807 = vadd.f32 %v801, %v805
    %v808 = vtanh.pop %v807
    %v809 = vmul.f32 %v800, %v808
    %s810 = scalar_lea.vmem %s0, 24
    %v811 = vld [vmem:[%s810] sm:$0xf]
    %813 = vset.pattern.permute.xlu0 0
    %814 = vperm.xlu0 %813, %v811
    %v815 = vpop.permute.xlu0 %814
    %v817 = vmul.f32 %v815, %v78
    %v818 = vmul.f32 %v815, %v82
    %820 = vrot.lane.b32.xlu0 %v809, 64
    %v821 = vpop.permute.xlu0 %820
    %v822 = vsel %vm85, %v821, 0
    %824 = vmatprep.subr.mxu0 %v40
    %825 = vmatpush1.msra.mxu0 %v39
    %826 = vmatprep.subr.mxu0 %v42
    %827 = vmatpush1.msra.mxu0 %v41
    %828 = vmatprep.subr.mxu0 %v44
    %829 = vmatpush1.msra.mxu0 %v43
    %830 = vmatprep.subr.mxu0 %v46
    %831 = vmatpush1.msra.mxu0 %v45
    %832 = vmatprep.subr.mxu0 %v48
    %833 = vmatpush1.msra.mxu0 %v47
    %834 = vmatprep.subr.mxu0 %v50
    %835 = vmatpush1.msra.mxu0 %v49
    %836 = vmatprep.subr.mxu0 %v52
    %837 = vmatpush1.msra.mxu0 %v51
    %838 = vmatprep.subr.mxu0 %v54
    %839 = vmatpush1.msra.mxu0 %v53
    %840 = vmatprep.subr.mxu0 0.0
    %841 = vmatpush1.msra.mxu0 0.0
    %842 = vmatprep.subr.mxu0 0.0
    %843 = vmatpush1.msra.mxu0 0.0
    %844 = vmatprep.subr.mxu0 0.0
    %845 = vmatpush1.msra.mxu0 0.0
    %846 = vmatprep.subr.mxu0 0.0
    %847 = vmatpush1.msra.mxu0 0.0
    %848 = vmatprep.subr.mxu0 0.0
    %849 = vmatpush1.msra.mxu0 0.0
    %850 = vmatprep.subr.mxu0 0.0
    %851 = vmatpush1.msra.mxu0 0.0
    %852 = vmatprep.subr.mxu0 0.0
    %853 = vmatpush1.msra.mxu0 0.0
    %854 = vmatprep.subr.mxu0 0.0
    %855 = vmatpush1.msra.mxu0 0.0
    %856 = vmatprep.subr.mxu0 0.0
    %857 = vmatpush1.msra.mxu0 0.0
    %858 = vmatprep.subr.mxu0 0.0
    %859 = vmatpush1.msra.mxu0 0.0
    %860 = vmatprep.subr.mxu0 0.0
    %861 = vmatpush1.msra.mxu0 0.0
    %862 = vmatprep.subr.mxu0 0.0
    %863 = vmatpush1.msra.mxu0 0.0
    %864 = vmatprep.subr.mxu0 0.0
    %865 = vmatpush1.msra.mxu0 0.0
    %866 = vmatprep.subr.mxu0 0.0
    %867 = vmatpush1.msra.mxu0 0.0
    %868 = vmatprep.subr.mxu0 0.0
    %869 = vmatpush1.msra.mxu0 0.0
    %870 = vmatprep.subr.mxu0 0.0
    %871 = vmatpush1.msra.mxu0 0.0
    %872 = vmatprep.subr.mxu0 0.0
    %873 = vmatpush1.msra.mxu0 0.0
    %874 = vmatprep.subr.mxu0 0.0
    %875 = vmatpush1.msra.mxu0 0.0
    %876 = vmatprep.subr.mxu0 0.0
    %877 = vmatpush1.msra.mxu0 0.0
    %878 = vmatprep.subr.mxu0 0.0
    %879 = vmatpush1.msra.mxu0 0.0
    %880 = vmatprep.subr.mxu0 0.0
    %881 = vmatpush1.msra.mxu0 0.0
    %882 = vmatprep.subr.mxu0 0.0
    %883 = vmatpush1.msra.mxu0 0.0
    %884 = vmatprep.subr.mxu0 0.0
    %885 = vmatpush1.msra.mxu0 0.0
    %886 = vmatprep.subr.mxu0 0.0
    %887 = vmatpush1.msra.mxu0 0.0
    %888 = vmatprep.mubr.f32.mxu0 0.0
    %889 = vmatmul.mubr.f32.gmra.mrb[0].mxu0 %v822
    %v890 = vpop.f32.mrb[0].mxu0
    %v891 = vadd.f32 %v817, %v890
    %v892 = vpop.f32.mrb[0].mxu0
    %v893 = vadd.f32 %v818, %v892
    %894 = vdwg.mxu0
    %895 = vset.pattern.permute.xlu0 1
    %896 = vperm.xlu0 %895, %v811
    %v897 = vpop.permute.xlu0 %896
    %v899 = vmul.f32 %v897, %v177
    %v900 = vmul.f32 %v897, %v181
    %v901 = vadd.f32 %v891, %v899
    %v902 = vadd.f32 %v893, %v900
    %v903 = vadd.f32 %v901, %v190
    %v904 = vadd.f32 %v902, %v194
    %v905 = vxor.u32 %v903, 2147483648
    %v906 = vmul.f32 %v905, 1.442695
    %v907 = vpow.pop %v906
    %v908 = vadd.f32 %v907, 1.0
    %v909 = vrcp.pop %v908
    %v910 = vmul.f32 1.0, %v909
    %v911 = vtanh.pop %v904
    %v912 = vxor.u32 %v904, 2147483648
    %v913 = vmul.f32 %v912, 1.442695
    %v914 = vpow.pop %v913
    %v915 = vadd.f32 %v914, 1.0
    %v916 = vrcp.pop %v915
    %v917 = vmul.f32 1.0, %v916
    %v918 = vmul.f32 %v910, %v807
    %v919 = vmul.f32 %v910, %v911
    %921 = vrot.lane.b32.xlu0 %v919, 64
    %v922 = vpop.permute.xlu0 %921
    %v924 = vadd.f32 %v918, %v922
    %v925 = vtanh.pop %v924
    %v926 = vmul.f32 %v917, %v925
    %s927 = scalar_lea.vmem %s0, 28
    %v928 = vld [vmem:[%s927] sm:$0xf]
    %930 = vset.pattern.permute.xlu0 0
    %931 = vperm.xlu0 %930, %v928
    %v932 = vpop.permute.xlu0 %931
    %v934 = vmul.f32 %v932, %v78
    %v935 = vmul.f32 %v932, %v82
    %937 = vrot.lane.b32.xlu0 %v926, 64
    %v938 = vpop.permute.xlu0 %937
    %v939 = vsel %vm85, %v938, 0
    %941 = vmatprep.subr.mxu0 %v40
    %942 = vmatpush1.msra.mxu0 %v39
    %943 = vmatprep.subr.mxu0 %v42
    %944 = vmatpush1.msra.mxu0 %v41
    %945 = vmatprep.subr.mxu0 %v44
    %946 = vmatpush1.msra.mxu0 %v43
    %947 = vmatprep.subr.mxu0 %v46
    %948 = vmatpush1.msra.mxu0 %v45
    %949 = vmatprep.subr.mxu0 %v48
    %950 = vmatpush1.msra.mxu0 %v47
    %951 = vmatprep.subr.mxu0 %v50
    %952 = vmatpush1.msra.mxu0 %v49
    %953 = vmatprep.subr.mxu0 %v52
    %954 = vmatpush1.msra.mxu0 %v51
    %955 = vmatprep.subr.mxu0 %v54
    %956 = vmatpush1.msra.mxu0 %v53
    %957 = vmatprep.subr.mxu0 0.0
    %958 = vmatpush1.msra.mxu0 0.0
    %959 = vmatprep.subr.mxu0 0.0
    %960 = vmatpush1.msra.mxu0 0.0
    %961 = vmatprep.subr.mxu0 0.0
    %962 = vmatpush1.msra.mxu0 0.0
    %963 = vmatprep.subr.mxu0 0.0
    %964 = vmatpush1.msra.mxu0 0.0
    %965 = vmatprep.subr.mxu0 0.0
    %966 = vmatpush1.msra.mxu0 0.0
    %967 = vmatprep.subr.mxu0 0.0
    %968 = vmatpush1.msra.mxu0 0.0
    %969 = vmatprep.subr.mxu0 0.0
    %970 = vmatpush1.msra.mxu0 0.0
    %971 = vmatprep.subr.mxu0 0.0
    %972 = vmatpush1.msra.mxu0 0.0
    %973 = vmatprep.subr.mxu0 0.0
    %974 = vmatpush1.msra.mxu0 0.0
    %975 = vmatprep.subr.mxu0 0.0
    %976 = vmatpush1.msra.mxu0 0.0
    %977 = vmatprep.subr.mxu0 0.0
    %978 = vmatpush1.msra.mxu0 0.0
    %979 = vmatprep.subr.mxu0 0.0
    %980 = vmatpush1.msra.mxu0 0.0
    %981 = vmatprep.subr.mxu0 0.0
    %982 = vmatpush1.msra.mxu0 0.0
    %983 = vmatprep.subr.mxu0 0.0
    %984 = vmatpush1.msra.mxu0 0.0
    %985 = vmatprep.subr.mxu0 0.0
    %986 = vmatpush1.msra.mxu0 0.0
    %987 = vmatprep.subr.mxu0 0.0
    %988 = vmatpush1.msra.mxu0 0.0
    %989 = vmatprep.subr.mxu0 0.0
    %990 = vmatpush1.msra.mxu0 0.0
    %991 = vmatprep.subr.mxu0 0.0
    %992 = vmatpush1.msra.mxu0 0.0
    %993 = vmatprep.subr.mxu0 0.0
    %994 = vmatpush1.msra.mxu0 0.0
    %995 = vmatprep.subr.mxu0 0.0
    %996 = vmatpush1.msra.mxu0 0.0
    %997 = vmatprep.subr.mxu0 0.0
    %998 = vmatpush1.msra.mxu0 0.0
    %999 = vmatprep.subr.mxu0 0.0
    %1000 = vmatpush1.msra.mxu0 0.0
    %1001 = vmatprep.subr.mxu0 0.0
    %1002 = vmatpush1.msra.mxu0 0.0
    %1003 = vmatprep.subr.mxu0 0.0
    %1004 = vmatpush1.msra.mxu0 0.0
    %1005 = vmatprep.mubr.f32.mxu0 0.0
    %1006 = vmatmul.mubr.f32.gmra.mrb[0].mxu0 %v939
    %v1007 = vpop.f32.mrb[0].mxu0
    %v1008 = vadd.f32 %v934, %v1007
    %v1009 = vpop.f32.mrb[0].mxu0
    %v1010 = vadd.f32 %v935, %v1009
    %1011 = vdwg.mxu0
    %1012 = vset.pattern.permute.xlu0 1
    %1013 = vperm.xlu0 %1012, %v928
    %v1014 = vpop.permute.xlu0 %1013
    %v1016 = vmul.f32 %v1014, %v177
    %v1017 = vmul.f32 %v1014, %v181
    %v1018 = vadd.f32 %v1008, %v1016
    %v1019 = vadd.f32 %v1010, %v1017
    %v1020 = vadd.f32 %v1018, %v190
    %v1021 = vadd.f32 %v1019, %v194
    %v1022 = vxor.u32 %v1020, 2147483648
    %v1023 = vmul.f32 %v1022, 1.442695
    %v1024 = vpow.pop %v1023
    %v1025 = vadd.f32 %v1024, 1.0
    %v1026 = vrcp.pop %v1025
    %v1027 = vmul.f32 1.0, %v1026
    %v1028 = vtanh.pop %v1021
    %v1029 = vxor.u32 %v1021, 2147483648
    %v1030 = vmul.f32 %v1029, 1.442695
    %v1031 = vpow.pop %v1030
    %v1032 = vadd.f32 %v1031, 1.0
    %v1033 = vrcp.pop %v1032
    %v1034 = vmul.f32 1.0, %v1033
    %v1035 = vmul.f32 %v1027, %v924
    %v1036 = vmul.f32 %v1027, %v1028
    %1038 = vrot.lane.b32.xlu0 %v1036, 64
    %v1039 = vpop.permute.xlu0 %1038
    %v1041 = vadd.f32 %v1035, %v1039
    %v1042 = vtanh.pop %v1041
    %v1043 = vmul.f32 %v1034, %v1042
    %1045 = vrot.lane.b32.xlu0 %v1043, 64
    %v1046 = vpop.permute.xlu0 %1045
    %vm1048 = vcmask 519168
    %1049 = vst.msk [vmem:[#allocation5] sm:$0xf] %vm1048, %v1046
    // Predicated region
    $region30: #{tpu_custom_call.1} parent=1 // pred_check
      _
    $region31: #{tpu_custom_call.1} parent=1 // pred_check_branch
      %1051 = sbr.rel (0) target = $region33
    $region32: #{tpu_custom_call.1} parent=1 // pred_region
      %s1053 = ssub.s32 64, 64
      %1054 = vsyncadd [#allocation4], %s1053
      %s1056 = sshll.u32 [#allocation5], 4
      %s1057 = int_to_ptr.vmem [resolvable:$true] %s1056
      %1059 = dma.vmem_to_hbm [thread:$0]  %s1057, 64, %s6, [#allocation4]
    $region33: #{tpu_custom_call.1} parent=1 // pred_fallthru
      _
    // Predicated region
    $region34: #{tpu_custom_call.1} parent=1 // pred_check
      _
    $region35: #{tpu_custom_call.1} parent=1 // pred_check_branch
      %1061 = sbr.rel (0) target = $region37
    $region36: #{tpu_custom_call.1} parent=1 // pred_region
      %1062 = dma.done [#allocation4], 64
    $region37: #{tpu_custom_call.1} parent=1 // pred_fallthru
      _
    %1063 = vsyncpa [#allocation3], 1
    %1064 = vsyncpa [#allocation4], 1

</llo_original>
